<compile_context>
chip_gen: v7x
topology: tpu7x:2x2x1
jax: 0.10.0
libtpu: 0.0.40
codegen_flags: <defaults>
</compile_context>

<pallas_src>
import functools

import jax
import jax.numpy as jnp
from jax.experimental import pallas as pl
from jax.experimental.pallas import tpu as pltpu


# ----------------------------------------------------------------------------
# Fused forward kernel
# ----------------------------------------------------------------------------
def make_fused_kernel(B, N, S, E, H, windows):
    """Builds the fused forward kernel for static shapes / window sizes."""
    L = N                      # conv length = max_n_sent
    B2 = 2 * B                 # x1 and x2 stacked on the batch axis
    nW = len(windows)
    # PyTorch Conv1d padding='same': left = (k-1)//2, right = (k-1) - left.
    lefts = [(k - 1) // 2 for k in windows]
    rights = [(k - 1) - l for k, l in zip(windows, lefts)]
    max_l, max_r = max(lefts), max(rights)
    EPS = 1e-8

    def kernel(*refs):
        x1_ref, x2_ref = refs[0], refs[1]         # each (B*N, S, E) f32
        w_refs = refs[2:2 + 4 * nW]               # per window: w1, b1, w2, b2
        o_ref = refs[2 + 4 * nW]                  # (B, 1) f32

        # ---- torch.mean(x, 2): mean over sentence tokens ----
        m1 = jnp.mean(x1_ref[...], axis=1)                       # (B*N, E)
        m2 = jnp.mean(x2_ref[...], axis=1)                       # (B*N, E)
        # Stack the two branches on batch: shared weights -> shared matmuls.
        mid = jnp.concatenate([m1, m2], axis=0).reshape(B2, L, E)

        # Pad the length axis ONCE with the max halo any window needs; each
        # window's im2col reads at a different base offset.
        mid_pad = jnp.concatenate(
            [jnp.zeros((B2, max_l, E), jnp.float32), mid,
             jnp.zeros((B2, max_r, E), jnp.float32)], axis=1)

        feats = []
        for wi, k in enumerate(windows):
            w1 = w_refs[4 * wi + 0][...]      # (k*E, H) bf16
            b1 = w_refs[4 * wi + 1][...]      # (1, H)  f32
            w2 = w_refs[4 * wi + 2][...]      # (k*H, H) bf16
            b2 = w_refs[4 * wi + 3][...]      # (1, H)  f32
            left, right = lefts[wi], rights[wi]
            base = max_l - left

            # Conv1d(E->H, k, 'same'): im2col -> one MXU matmul (k*E contraction).
            cols1 = jnp.concatenate(
                [mid_pad[:, base + t:base + t + L, :] for t in range(k)],
                axis=2).reshape(B2 * L, k * E)
            y1 = jnp.dot(cols1.astype(jnp.bfloat16), w1,
                         preferred_element_type=jnp.float32)
            y1 = jnp.maximum(y1 + b1, 0.0).reshape(B2, L, H)      # bias + ReLU

            # MaxPool1d(kernel_size=2, stride=1)
            Lp = L - 1
            p1 = jnp.maximum(y1[:, :Lp, :], y1[:, 1:, :])         # (2B, L-1, H)

            # Conv1d(H->H, k, 'same'): im2col -> one MXU matmul (k*H contraction).
            p1_pad = jnp.concatenate(
                [jnp.zeros((B2, left, H), jnp.float32), p1,
                 jnp.zeros((B2, right, H), jnp.float32)], axis=1)
            cols2 = jnp.concatenate(
                [p1_pad[:, t:t + Lp, :] for t in range(k)],
                axis=2).reshape(B2 * Lp, k * H)
            y2 = jnp.dot(cols2.astype(jnp.bfloat16), w2,
                         preferred_element_type=jnp.float32)
            y2 = jnp.maximum(y2 + b2, 0.0).reshape(B2, Lp, H)

            # MaxPool1d(kernel_size=max_n_sent - 1): global max over length.
            feats.append(jnp.max(y2, axis=1))                     # (2B, H)

        # Concat windows along the lane axis -> (2B, nW*H); stays in vregs.
        f = jnp.concatenate(feats, axis=1)
        a, b = f[:B, :], f[B:, :]

        # torch.nn.CosineSimilarity(dim=1): dot / sqrt(max(|a|^2*|b|^2, eps^2)),
        # then torch.clamp(., 0, 1).
        w12 = jnp.sum(a * b, axis=1, keepdims=True)
        wa = jnp.sum(a * a, axis=1, keepdims=True)
        wb = jnp.sum(b * b, axis=1, keepdims=True)
        denom = jnp.sqrt(jnp.maximum(wa * wb, EPS * EPS))
        o_ref[...] = jnp.clip(w12 / denom, 0.0, 1.0)

    return kernel


# ----------------------------------------------------------------------------
# Parameter init (PyTorch Conv1d layout) + one-time kernel-layout preparation
# ----------------------------------------------------------------------------
def init_params(key, emb_size, n_hidden, windows):
    """Deterministic init in PyTorch layout: w (Cout, Cin, k), b (Cout,)."""
    params = []
    for i, k in enumerate(windows):
        k1, k2, k3, k4 = jax.random.split(jax.random.fold_in(key, i), 4)
        bound1 = 1.0 / float(emb_size * k) ** 0.5
        bound2 = 1.0 / float(n_hidden * k) ** 0.5
        params.append(dict(
            w1=jax.random.uniform(k1, (n_hidden, emb_size, k), jnp.float32, -bound1, bound1),
            b1=jax.random.uniform(k2, (n_hidden,), jnp.float32, -bound1, bound1),
            w2=jax.random.uniform(k3, (n_hidden, n_hidden, k), jnp.float32, -bound2, bound2),
            b2=jax.random.uniform(k4, (n_hidden,), jnp.float32, -bound2, bound2),
        ))
    return params


def prepare_params(params, emb_size, n_hidden, windows):
    """One-time layout change (hoisted out of the forward): PyTorch (Cout, Cin, k)
    -> im2col layout (k*Cin, Cout). MXU operands in bf16, biases stay f32."""
    prepped = []
    for k, p in zip(windows, params):
        w1 = jnp.transpose(p["w1"], (2, 1, 0)).reshape(k * emb_size, n_hidden)
        w2 = jnp.transpose(p["w2"], (2, 1, 0)).reshape(k * n_hidden, n_hidden)
        prepped.append(dict(
            w1=w1.astype(jnp.bfloat16),
            b1=p["b1"].reshape(1, n_hidden).astype(jnp.float32),
            w2=w2.astype(jnp.bfloat16),
            b2=p["b2"].reshape(1, n_hidden).astype(jnp.float32),
        ))
    return prepped


# ----------------------------------------------------------------------------
# Forward: one pallas_call for the whole model
# ----------------------------------------------------------------------------
def cnn_model_forward(prepped, x1, x2, windows):
    B, N, S, E = x1.shape
    H = prepped[0]["b1"].shape[1]
    # Free (contiguous) reshapes only; no cross-input concatenation in HBM.
    x1f = x1.reshape(B * N, S, E).astype(jnp.float32)
    x2f = x2.reshape(B * N, S, E).astype(jnp.float32)

    flat_w = []
    for p in prepped:
        flat_w += [p["w1"], p["b1"], p["w2"], p["b2"]]

    kern = make_fused_kernel(B, N, S, E, H, windows)
    # Whole-array VMEM blocks: total working set is ~100 KiB at these shapes,
    # so no grid/pipelining is needed.  For large B/L, add a batch-tiled grid
    # with dimension_semantics=("parallel",) so v7x can split tiles across its
    # 2 TCs and stay under its 64 MiB VMEM.
    out = pl.pallas_call(
        kern,
        out_shape=jax.ShapeDtypeStruct((B, 1), jnp.float32),
        in_specs=[pl.BlockSpec(memory_space=pltpu.MemorySpace.VMEM)] * (2 + len(flat_w)),
        out_specs=pl.BlockSpec(memory_space=pltpu.MemorySpace.VMEM),
    )(x1f, x2f, *flat_w)
    return out[:, 0]


if __name__ == "__main__":
    # Small shapes consistent with the module.
    B = 2
    emb_size = 32
    max_n_sent = 8
    sent_length = 8
    n_hidden = 32
    windows = (3, 5)

    key = jax.random.PRNGKey(0)
    kx1, kx2, kp = jax.random.split(key, 3)
    x1 = jax.random.normal(kx1, (B, max_n_sent, sent_length, emb_size), jnp.float32)
    x2 = jax.random.normal(kx2, (B, max_n_sent, sent_length, emb_size), jnp.float32)

    params = init_params(kp, emb_size, n_hidden, windows)
    prepped = prepare_params(params, emb_size, n_hidden, windows)   # one-time layout

    fwd = jax.jit(functools.partial(cnn_model_forward, windows=windows))
    y_hat = fwd(prepped, x1, x2)
    jax.block_until_ready(y_hat)

    assert y_hat.shape == (B,)
    assert bool(jnp.all(y_hat >= 0.0)) and bool(jnp.all(y_hat <= 1.0))
    print("KERNEL_OK")
</pallas_src>

<mosaic_0001>
module attributes {stable_mosaic.version = 11 : i64} {
  func.func @kernel(%arg0: memref<16x8x32xf32, #tpu.memory_space<vmem>>, %arg1: memref<16x8x32xf32, #tpu.memory_space<vmem>>, %arg2: memref<96x32xbf16, #tpu.memory_space<vmem>>, %arg3: memref<1x32xf32, #tpu.memory_space<vmem>>, %arg4: memref<96x32xbf16, #tpu.memory_space<vmem>>, %arg5: memref<1x32xf32, #tpu.memory_space<vmem>>, %arg6: memref<160x32xbf16, #tpu.memory_space<vmem>>, %arg7: memref<1x32xf32, #tpu.memory_space<vmem>>, %arg8: memref<160x32xbf16, #tpu.memory_space<vmem>>, %arg9: memref<1x32xf32, #tpu.memory_space<vmem>>, %arg10: memref<2x1xf32, #tpu.memory_space<vmem>>) attributes {dimension_semantics = [], scalar_prefetch = 0 : i64, scratch_operands = 0 : i64, tpu.core_type = #tpu.core_type<tc>} {
    %c0 = arith.constant 0 : index
    %c0_0 = arith.constant 0 : index
    %c0_1 = arith.constant 0 : index
    %0 = vector.load %arg0[%c0, %c0_0, %c0_1] : memref<16x8x32xf32, #tpu.memory_space<vmem>>, vector<16x8x32xf32>
    %cst = arith.constant dense<0.000000e+00> : vector<16x32xf32>
    %1 = vector.multi_reduction <add>, %0, %cst [1] : vector<16x8x32xf32> to vector<16x32xf32>
    %cst_2 = arith.constant 8.000000e+00 : f32
    %2 = vector.broadcast %cst_2 : f32 to vector<16x32xf32>
    %3 = arith.divf %1, %2 : vector<16x32xf32>
    %c0_3 = arith.constant 0 : index
    %c0_4 = arith.constant 0 : index
    %c0_5 = arith.constant 0 : index
    %4 = vector.load %arg1[%c0_3, %c0_4, %c0_5] : memref<16x8x32xf32, #tpu.memory_space<vmem>>, vector<16x8x32xf32>
    %cst_6 = arith.constant dense<0.000000e+00> : vector<16x32xf32>
    %5 = vector.multi_reduction <add>, %4, %cst_6 [1] : vector<16x8x32xf32> to vector<16x32xf32>
    %cst_7 = arith.constant 8.000000e+00 : f32
    %6 = vector.broadcast %cst_7 : f32 to vector<16x32xf32>
    %7 = arith.divf %5, %6 : vector<16x32xf32>
    %8 = tpu.concatenate %3, %7 in 0 : vector<16x32xf32>, vector<16x32xf32> -> vector<32x32xf32>
    %9 = vector.shape_cast %8 : vector<32x32xf32> to vector<4x8x32xf32>
    %cst_8 = arith.constant 0.000000e+00 : f32
    %10 = vector.broadcast %cst_8 : f32 to vector<4x2x32xf32>
    %cst_9 = arith.constant 0.000000e+00 : f32
    %11 = vector.broadcast %cst_9 : f32 to vector<4x2x32xf32>
    %12 = tpu.concatenate %10, %9, %11 in 1 : vector<4x2x32xf32>, vector<4x8x32xf32>, vector<4x2x32xf32> -> vector<4x12x32xf32>
    %c0_10 = arith.constant 0 : index
    %c0_11 = arith.constant 0 : index
    %13 = vector.load %arg2[%c0_10, %c0_11] : memref<96x32xbf16, #tpu.memory_space<vmem>>, vector<96x32xbf16>
    %c0_12 = arith.constant 0 : index
    %c0_13 = arith.constant 0 : index
    %14 = vector.load %arg3[%c0_12, %c0_13] : memref<1x32xf32, #tpu.memory_space<vmem>>, vector<1x32xf32>
    %c0_14 = arith.constant 0 : index
    %c0_15 = arith.constant 0 : index
    %15 = vector.load %arg4[%c0_14, %c0_15] : memref<96x32xbf16, #tpu.memory_space<vmem>>, vector<96x32xbf16>
    %c0_16 = arith.constant 0 : index
    %c0_17 = arith.constant 0 : index
    %16 = vector.load %arg5[%c0_16, %c0_17] : memref<1x32xf32, #tpu.memory_space<vmem>>, vector<1x32xf32>
    %17 = vector.extract_strided_slice %12 {offsets = [0, 1, 0], sizes = [4, 8, 32], strides = [1, 1, 1]} : vector<4x12x32xf32> to vector<4x8x32xf32>
    %18 = vector.extract_strided_slice %12 {offsets = [0, 2, 0], sizes = [4, 8, 32], strides = [1, 1, 1]} : vector<4x12x32xf32> to vector<4x8x32xf32>
    %19 = vector.extract_strided_slice %12 {offsets = [0, 3, 0], sizes = [4, 8, 32], strides = [1, 1, 1]} : vector<4x12x32xf32> to vector<4x8x32xf32>
    %20 = tpu.concatenate %17, %18, %19 in 2 : vector<4x8x32xf32>, vector<4x8x32xf32>, vector<4x8x32xf32> -> vector<4x8x96xf32>
    %21 = vector.shape_cast %20 : vector<4x8x96xf32> to vector<32x96xf32>
    %22 = arith.truncf %21 : vector<32x96xf32> to vector<32x96xbf16>
    %cst_18 = arith.constant dense<0.000000e+00> : vector<32x32xf32>
    %23 = tpu.matmul %22, %13, %cst_18 {dimension_numbers = #tpu.dot_dimension_numbers<[1], [0], [0], [1], [0, 0, 1, 1], [], []>} : vector<32x96xbf16>, vector<96x32xbf16>, vector<32x32xf32> -> vector<32x32xf32>
    %24 = vector.broadcast %14 : vector<1x32xf32> to vector<32x32xf32>
    %25 = arith.addf %23, %24 : vector<32x32xf32>
    %cst_19 = arith.constant 0.000000e+00 : f32
    %26 = vector.broadcast %cst_19 : f32 to vector<32x32xf32>
    %27 = arith.maximumf %25, %26 : vector<32x32xf32>
    %28 = vector.shape_cast %27 : vector<32x32xf32> to vector<4x8x32xf32>
    %29 = vector.extract_strided_slice %28 {offsets = [0, 0, 0], sizes = [4, 7, 32], strides = [1, 1, 1]} : vector<4x8x32xf32> to vector<4x7x32xf32>
    %30 = vector.extract_strided_slice %28 {offsets = [0, 1, 0], sizes = [4, 7, 32], strides = [1, 1, 1]} : vector<4x8x32xf32> to vector<4x7x32xf32>
    %31 = arith.maximumf %29, %30 : vector<4x7x32xf32>
    %cst_20 = arith.constant 0.000000e+00 : f32
    %32 = vector.broadcast %cst_20 : f32 to vector<4x1x32xf32>
    %cst_21 = arith.constant 0.000000e+00 : f32
    %33 = vector.broadcast %cst_21 : f32 to vector<4x1x32xf32>
    %34 = tpu.concatenate %32, %31, %33 in 1 : vector<4x1x32xf32>, vector<4x7x32xf32>, vector<4x1x32xf32> -> vector<4x9x32xf32>
    %35 = vector.extract_strided_slice %34 {offsets = [0, 0, 0], sizes = [4, 7, 32], strides = [1, 1, 1]} : vector<4x9x32xf32> to vector<4x7x32xf32>
    %36 = vector.extract_strided_slice %34 {offsets = [0, 1, 0], sizes = [4, 7, 32], strides = [1, 1, 1]} : vector<4x9x32xf32> to vector<4x7x32xf32>
    %37 = vector.extract_strided_slice %34 {offsets = [0, 2, 0], sizes = [4, 7, 32], strides = [1, 1, 1]} : vector<4x9x32xf32> to vector<4x7x32xf32>
    %38 = tpu.concatenate %35, %36, %37 in 2 : vector<4x7x32xf32>, vector<4x7x32xf32>, vector<4x7x32xf32> -> vector<4x7x96xf32>
    %39 = vector.shape_cast %38 : vector<4x7x96xf32> to vector<28x96xf32>
    %40 = arith.truncf %39 : vector<28x96xf32> to vector<28x96xbf16>
    %cst_22 = arith.constant dense<0.000000e+00> : vector<28x32xf32>
    %41 = tpu.matmul %40, %15, %cst_22 {dimension_numbers = #tpu.dot_dimension_numbers<[1], [0], [0], [1], [0, 0, 1, 1], [], []>} : vector<28x96xbf16>, vector<96x32xbf16>, vector<28x32xf32> -> vector<28x32xf32>
    %42 = vector.broadcast %16 : vector<1x32xf32> to vector<28x32xf32>
    %43 = arith.addf %41, %42 : vector<28x32xf32>
    %cst_23 = arith.constant 0.000000e+00 : f32
    %44 = vector.broadcast %cst_23 : f32 to vector<28x32xf32>
    %45 = arith.maximumf %43, %44 : vector<28x32xf32>
    %46 = vector.shape_cast %45 : vector<28x32xf32> to vector<4x7x32xf32>
    %cst_24 = arith.constant dense<0xFF800000> : vector<4x32xf32>
    %47 = vector.multi_reduction <maximumf>, %46, %cst_24 [1] : vector<4x7x32xf32> to vector<4x32xf32>
    %c0_25 = arith.constant 0 : index
    %c0_26 = arith.constant 0 : index
    %48 = vector.load %arg6[%c0_25, %c0_26] : memref<160x32xbf16, #tpu.memory_space<vmem>>, vector<160x32xbf16>
    %c0_27 = arith.constant 0 : index
    %c0_28 = arith.constant 0 : index
    %49 = vector.load %arg7[%c0_27, %c0_28] : memref<1x32xf32, #tpu.memory_space<vmem>>, vector<1x32xf32>
    %c0_29 = arith.constant 0 : index
    %c0_30 = arith.constant 0 : index
    %50 = vector.load %arg8[%c0_29, %c0_30] : memref<160x32xbf16, #tpu.memory_space<vmem>>, vector<160x32xbf16>
    %c0_31 = arith.constant 0 : index
    %c0_32 = arith.constant 0 : index
    %51 = vector.load %arg9[%c0_31, %c0_32] : memref<1x32xf32, #tpu.memory_space<vmem>>, vector<1x32xf32>
    %52 = vector.extract_strided_slice %12 {offsets = [0, 0, 0], sizes = [4, 8, 32], strides = [1, 1, 1]} : vector<4x12x32xf32> to vector<4x8x32xf32>
    %53 = vector.extract_strided_slice %12 {offsets = [0, 1, 0], sizes = [4, 8, 32], strides = [1, 1, 1]} : vector<4x12x32xf32> to vector<4x8x32xf32>
    %54 = vector.extract_strided_slice %12 {offsets = [0, 2, 0], sizes = [4, 8, 32], strides = [1, 1, 1]} : vector<4x12x32xf32> to vector<4x8x32xf32>
    %55 = vector.extract_strided_slice %12 {offsets = [0, 3, 0], sizes = [4, 8, 32], strides = [1, 1, 1]} : vector<4x12x32xf32> to vector<4x8x32xf32>
    %56 = vector.extract_strided_slice %12 {offsets = [0, 4, 0], sizes = [4, 8, 32], strides = [1, 1, 1]} : vector<4x12x32xf32> to vector<4x8x32xf32>
    %57 = tpu.concatenate %52, %53, %54, %55, %56 in 2 : vector<4x8x32xf32>, vector<4x8x32xf32>, vector<4x8x32xf32>, vector<4x8x32xf32>, vector<4x8x32xf32> -> vector<4x8x160xf32>
    %58 = vector.shape_cast %57 : vector<4x8x160xf32> to vector<32x160xf32>
    %59 = arith.truncf %58 : vector<32x160xf32> to vector<32x160xbf16>
    %cst_33 = arith.constant dense<0.000000e+00> : vector<32x32xf32>
    %60 = tpu.matmul %59, %48, %cst_33 {dimension_numbers = #tpu.dot_dimension_numbers<[1], [0], [0], [1], [0, 0, 1, 1], [], []>} : vector<32x160xbf16>, vector<160x32xbf16>, vector<32x32xf32> -> vector<32x32xf32>
    %61 = vector.broadcast %49 : vector<1x32xf32> to vector<32x32xf32>
    %62 = arith.addf %60, %61 : vector<32x32xf32>
    %cst_34 = arith.constant 0.000000e+00 : f32
    %63 = vector.broadcast %cst_34 : f32 to vector<32x32xf32>
    %64 = arith.maximumf %62, %63 : vector<32x32xf32>
    %65 = vector.shape_cast %64 : vector<32x32xf32> to vector<4x8x32xf32>
    %66 = vector.extract_strided_slice %65 {offsets = [0, 0, 0], sizes = [4, 7, 32], strides = [1, 1, 1]} : vector<4x8x32xf32> to vector<4x7x32xf32>
    %67 = vector.extract_strided_slice %65 {offsets = [0, 1, 0], sizes = [4, 7, 32], strides = [1, 1, 1]} : vector<4x8x32xf32> to vector<4x7x32xf32>
    %68 = arith.maximumf %66, %67 : vector<4x7x32xf32>
    %cst_35 = arith.constant 0.000000e+00 : f32
    %69 = vector.broadcast %cst_35 : f32 to vector<4x2x32xf32>
    %cst_36 = arith.constant 0.000000e+00 : f32
    %70 = vector.broadcast %cst_36 : f32 to vector<4x2x32xf32>
    %71 = tpu.concatenate %69, %68, %70 in 1 : vector<4x2x32xf32>, vector<4x7x32xf32>, vector<4x2x32xf32> -> vector<4x11x32xf32>
    %72 = vector.extract_strided_slice %71 {offsets = [0, 0, 0], sizes = [4, 7, 32], strides = [1, 1, 1]} : vector<4x11x32xf32> to vector<4x7x32xf32>
    %73 = vector.extract_strided_slice %71 {offsets = [0, 1, 0], sizes = [4, 7, 32], strides = [1, 1, 1]} : vector<4x11x32xf32> to vector<4x7x32xf32>
    %74 = vector.extract_strided_slice %71 {offsets = [0, 2, 0], sizes = [4, 7, 32], strides = [1, 1, 1]} : vector<4x11x32xf32> to vector<4x7x32xf32>
    %75 = vector.extract_strided_slice %71 {offsets = [0, 3, 0], sizes = [4, 7, 32], strides = [1, 1, 1]} : vector<4x11x32xf32> to vector<4x7x32xf32>
    %76 = vector.extract_strided_slice %71 {offsets = [0, 4, 0], sizes = [4, 7, 32], strides = [1, 1, 1]} : vector<4x11x32xf32> to vector<4x7x32xf32>
    %77 = tpu.concatenate %72, %73, %74, %75, %76 in 2 : vector<4x7x32xf32>, vector<4x7x32xf32>, vector<4x7x32xf32>, vector<4x7x32xf32>, vector<4x7x32xf32> -> vector<4x7x160xf32>
    %78 = vector.shape_cast %77 : vector<4x7x160xf32> to vector<28x160xf32>
    %79 = arith.truncf %78 : vector<28x160xf32> to vector<28x160xbf16>
    %cst_37 = arith.constant dense<0.000000e+00> : vector<28x32xf32>
    %80 = tpu.matmul %79, %50, %cst_37 {dimension_numbers = #tpu.dot_dimension_numbers<[1], [0], [0], [1], [0, 0, 1, 1], [], []>} : vector<28x160xbf16>, vector<160x32xbf16>, vector<28x32xf32> -> vector<28x32xf32>
    %81 = vector.broadcast %51 : vector<1x32xf32> to vector<28x32xf32>
    %82 = arith.addf %80, %81 : vector<28x32xf32>
    %cst_38 = arith.constant 0.000000e+00 : f32
    %83 = vector.broadcast %cst_38 : f32 to vector<28x32xf32>
    %84 = arith.maximumf %82, %83 : vector<28x32xf32>
    %85 = vector.shape_cast %84 : vector<28x32xf32> to vector<4x7x32xf32>
    %cst_39 = arith.constant dense<0xFF800000> : vector<4x32xf32>
    %86 = vector.multi_reduction <maximumf>, %85, %cst_39 [1] : vector<4x7x32xf32> to vector<4x32xf32>
    %87 = tpu.concatenate %47, %86 in 1 : vector<4x32xf32>, vector<4x32xf32> -> vector<4x64xf32>
    %88 = vector.extract_strided_slice %87 {offsets = [0, 0], sizes = [2, 64], strides = [1, 1]} : vector<4x64xf32> to vector<2x64xf32>
    %89 = vector.extract_strided_slice %87 {offsets = [2, 0], sizes = [2, 64], strides = [1, 1]} : vector<4x64xf32> to vector<2x64xf32>
    %90 = arith.mulf %88, %89 : vector<2x64xf32>
    %cst_40 = arith.constant dense<0.000000e+00> : vector<2xf32>
    %91 = vector.multi_reduction <add>, %90, %cst_40 [1] : vector<2x64xf32> to vector<2xf32>
    %92 = vector.shape_cast %91 : vector<2xf32> to vector<2x1xf32>
    %93 = arith.mulf %88, %88 : vector<2x64xf32>
    %cst_41 = arith.constant dense<0.000000e+00> : vector<2xf32>
    %94 = vector.multi_reduction <add>, %93, %cst_41 [1] : vector<2x64xf32> to vector<2xf32>
    %95 = vector.shape_cast %94 : vector<2xf32> to vector<2x1xf32>
    %96 = arith.mulf %89, %89 : vector<2x64xf32>
    %cst_42 = arith.constant dense<0.000000e+00> : vector<2xf32>
    %97 = vector.multi_reduction <add>, %96, %cst_42 [1] : vector<2x64xf32> to vector<2xf32>
    %98 = vector.shape_cast %97 : vector<2xf32> to vector<2x1xf32>
    %99 = arith.mulf %95, %98 : vector<2x1xf32>
    %cst_43 = arith.constant 1.000000e-16 : f32
    %100 = vector.broadcast %cst_43 : f32 to vector<2x1xf32>
    %101 = arith.maximumf %99, %100 : vector<2x1xf32>
    %102 = math.sqrt %101 : vector<2x1xf32>
    %103 = arith.divf %92, %102 : vector<2x1xf32>
    %cst_44 = arith.constant 0.000000e+00 : f32
    %cst_45 = arith.constant 1.000000e+00 : f32
    %104 = vector.broadcast %cst_44 : f32 to vector<2x1xf32>
    %105 = arith.maximumf %104, %103 : vector<2x1xf32>
    %106 = vector.broadcast %cst_45 : f32 to vector<2x1xf32>
    %107 = arith.minimumf %106, %105 : vector<2x1xf32>
    %c0_46 = arith.constant 0 : index
    %c0_47 = arith.constant 0 : index
    %108 = vector.load %arg10[%c0_46, %c0_47] : memref<2x1xf32, #tpu.memory_space<vmem>>, vector<2x1xf32>
    tpu.vector_store %arg10[%c0_46, %c0_47], %107 {strides = array<i32>} : memref<2x1xf32, #tpu.memory_space<vmem>>, vector<2x1xf32>,
    return
  }
}

</mosaic_0001>

<llo_original>
// kernel: cnn_model_forward.1
$region0: #{cnn_model_forward.1}
  #allocation0 [shape = 'u32[]', space=smem, size = 0x4, offset = 0x4, fixed_abs, tag = 'smem constant byte address 0x4 - core index']
  #allocation1 [shape = 'u32[144,128]{1,0:T(1,128)}', space=vmem, size = 0x12000, scoped, tag = 'internal scratch']
  %s0 = inlined_call_operand.vmem [shape: f32[16,8,32], index: 0, kind: input, shape index: {}]
  %s1 = inlined_call_operand.vmem [shape: f32[16,8,32], index: 1, kind: input, shape index: {}]
  %s2 = inlined_call_operand.vmem [shape: bf16[96,32], index: 2, kind: input, shape index: {}]
  %s3 = inlined_call_operand.vmem [shape: f32[1,32], index: 3, kind: input, shape index: {}]
  %s4 = inlined_call_operand.vmem [shape: bf16[96,32], index: 4, kind: input, shape index: {}]
  %s5 = inlined_call_operand.vmem [shape: f32[1,32], index: 5, kind: input, shape index: {}]
  %s6 = inlined_call_operand.vmem [shape: bf16[160,32], index: 6, kind: input, shape index: {}]
  %s7 = inlined_call_operand.vmem [shape: f32[1,32], index: 7, kind: input, shape index: {}]
  %s8 = inlined_call_operand.vmem [shape: bf16[160,32], index: 8, kind: input, shape index: {}]
  %s9 = inlined_call_operand.vmem [shape: f32[1,32], index: 9, kind: input, shape index: {}]
  %s10 = inlined_call_operand.vmem [shape: f32[2,1], index: 10, kind: output, shape index: {}]
  %s11 = sld [smem:[#allocation0]]
  $region50: #{cnn_model_forward.1} parent=0
    _
  %s13 = ssub.s32 1, %s11
  %s14 = scalar_select 0, %s13, %s11
  // Predicated region
  $region2: #{cnn_model_forward.1} parent=0 // pred_check
    _
  $region3: #{cnn_model_forward.1} parent=0 // pred_check_branch
    %16 = sbr.rel (0) target = $region5
  $region4: #{cnn_model_forward.1} parent=0 // pred_region
    _
  $region5: #{cnn_model_forward.1} parent=0 // pred_fallthru
    _
  // Predicated region
  $region6: #{cnn_model_forward.1} parent=0 // pred_check
    _
  $region7: #{cnn_model_forward.1} parent=0 // pred_check_branch
    %18 = sbr.rel (0) target = $region9
  $region8: #{cnn_model_forward.1} parent=0 // pred_region
    _
  $region9: #{cnn_model_forward.1} parent=0 // pred_fallthru
    _
  // Predicated region
  $region10: #{cnn_model_forward.1} parent=0 // pred_check
    _
  $region11: #{cnn_model_forward.1} parent=0 // pred_check_branch
    %20 = sbr.rel (0) target = $region13
  $region12: #{cnn_model_forward.1} parent=0 // pred_region
    _
  $region13: #{cnn_model_forward.1} parent=0 // pred_fallthru
    _
  // Predicated region
  $region14: #{cnn_model_forward.1} parent=0 // pred_check
    _
  $region15: #{cnn_model_forward.1} parent=0 // pred_check_branch
    %22 = sbr.rel (0) target = $region17
  $region16: #{cnn_model_forward.1} parent=0 // pred_region
    _
  $region17: #{cnn_model_forward.1} parent=0 // pred_fallthru
    _
  // Predicated region
  $region18: #{cnn_model_forward.1} parent=0 // pred_check
    _
  $region19: #{cnn_model_forward.1} parent=0 // pred_check_branch
    %24 = sbr.rel (0) target = $region21
  $region20: #{cnn_model_forward.1} parent=0 // pred_region
    _
  $region21: #{cnn_model_forward.1} parent=0 // pred_fallthru
    _
  // Predicated region
  $region22: #{cnn_model_forward.1} parent=0 // pred_check
    _
  $region23: #{cnn_model_forward.1} parent=0 // pred_check_branch
    %26 = sbr.rel (0) target = $region25
  $region24: #{cnn_model_forward.1} parent=0 // pred_region
    _
  $region25: #{cnn_model_forward.1} parent=0 // pred_fallthru
    _
  // Predicated region
  $region26: #{cnn_model_forward.1} parent=0 // pred_check
    _
  $region27: #{cnn_model_forward.1} parent=0 // pred_check_branch
    %28 = sbr.rel (0) target = $region29
  $region28: #{cnn_model_forward.1} parent=0 // pred_region
    _
  $region29: #{cnn_model_forward.1} parent=0 // pred_fallthru
    _
  // Predicated region
  $region30: #{cnn_model_forward.1} parent=0 // pred_check
    _
  $region31: #{cnn_model_forward.1} parent=0 // pred_check_branch
    %30 = sbr.rel (0) target = $region33
  $region32: #{cnn_model_forward.1} parent=0 // pred_region
    _
  $region33: #{cnn_model_forward.1} parent=0 // pred_fallthru
    _
  // Predicated region
  $region34: #{cnn_model_forward.1} parent=0 // pred_check
    _
  $region35: #{cnn_model_forward.1} parent=0 // pred_check_branch
    %32 = sbr.rel (0) target = $region37
  $region36: #{cnn_model_forward.1} parent=0 // pred_region
    _
  $region37: #{cnn_model_forward.1} parent=0 // pred_fallthru
    _
  // Predicated region
  $region38: #{cnn_model_forward.1} parent=0 // pred_check
    _
  $region39: #{cnn_model_forward.1} parent=0 // pred_check_branch
    %34 = sbr.rel (0) target = $region41
  $region40: #{cnn_model_forward.1} parent=0 // pred_region
    _
  $region41: #{cnn_model_forward.1} parent=0 // pred_fallthru
    _
  %v36 = vld [vmem:[%s0] sm:$0xff]
  %v37 = vld [vmem:[%s0 + $0x8] sm:$0xff]
  %v38 = vld [vmem:[%s0 + $0x10] sm:$0xff]
  %v39 = vld [vmem:[%s0 + $0x18] sm:$0xff]
  %v40 = vld [vmem:[%s0 + $0x20] sm:$0xff]
  %v41 = vld [vmem:[%s0 + $0x28] sm:$0xff]
  %v42 = vld [vmem:[%s0 + $0x30] sm:$0xff]
  %v43 = vld [vmem:[%s0 + $0x38] sm:$0xff]
  %v44 = vld [vmem:[%s0 + $0x40] sm:$0xff]
  %v45 = vld [vmem:[%s0 + $0x48] sm:$0xff]
  %v46 = vld [vmem:[%s0 + $0x50] sm:$0xff]
  %v47 = vld [vmem:[%s0 + $0x58] sm:$0xff]
  %v48 = vld [vmem:[%s0 + $0x60] sm:$0xff]
  %v49 = vld [vmem:[%s0 + $0x68] sm:$0xff]
  %v50 = vld [vmem:[%s0 + $0x70] sm:$0xff]
  %v51 = vld [vmem:[%s0 + $0x78] sm:$0xff]
  %vm52 = vcmask 261120
  %v53 = vsel %vm52, %v36, 0.0
  %v54 = vrot.slane %v53, 4
  %v55 = vadd.f32 %v53, %v54
  %v56 = vrot.slane %v55, 2
  %v57 = vadd.f32 %v55, %v56
  %v58 = vrot.slane %v57, 1
  %v59 = vadd.f32 %v57, %v58
  %v60 = vsel %vm52, %v37, 0.0
  %v61 = vrot.slane %v60, 4
  %v62 = vadd.f32 %v60, %v61
  %v63 = vrot.slane %v62, 2
  %v64 = vadd.f32 %v62, %v63
  %v65 = vrot.slane %v64, 1
  %v66 = vadd.f32 %v64, %v65
  %v67 = vsel %vm52, %v38, 0.0
  %v68 = vrot.slane %v67, 4
  %v69 = vadd.f32 %v67, %v68
  %v70 = vrot.slane %v69, 2
  %v71 = vadd.f32 %v69, %v70
  %v72 = vrot.slane %v71, 1
  %v73 = vadd.f32 %v71, %v72
  %v74 = vsel %vm52, %v39, 0.0
  %v75 = vrot.slane %v74, 4
  %v76 = vadd.f32 %v74, %v75
  %v77 = vrot.slane %v76, 2
  %v78 = vadd.f32 %v76, %v77
  %v79 = vrot.slane %v78, 1
  %v80 = vadd.f32 %v78, %v79
  %v81 = vsel %vm52, %v40, 0.0
  %v82 = vrot.slane %v81, 4
  %v83 = vadd.f32 %v81, %v82
  %v84 = vrot.slane %v83, 2
  %v85 = vadd.f32 %v83, %v84
  %v86 = vrot.slane %v85, 1
  %v87 = vadd.f32 %v85, %v86
  %v88 = vsel %vm52, %v41, 0.0
  %v89 = vrot.slane %v88, 4
  %v90 = vadd.f32 %v88, %v89
  %v91 = vrot.slane %v90, 2
  %v92 = vadd.f32 %v90, %v91
  %v93 = vrot.slane %v92, 1
  %v94 = vadd.f32 %v92, %v93
  %v95 = vsel %vm52, %v42, 0.0
  %v96 = vrot.slane %v95, 4
  %v97 = vadd.f32 %v95, %v96
  %v98 = vrot.slane %v97, 2
  %v99 = vadd.f32 %v97, %v98
  %v100 = vrot.slane %v99, 1
  %v101 = vadd.f32 %v99, %v100
  %v102 = vsel %vm52, %v43, 0.0
  %v103 = vrot.slane %v102, 4
  %v104 = vadd.f32 %v102, %v103
  %v105 = vrot.slane %v104, 2
  %v106 = vadd.f32 %v104, %v105
  %v107 = vrot.slane %v106, 1
  %v108 = vadd.f32 %v106, %v107
  %v109 = vsel %vm52, %v44, 0.0
  %v110 = vrot.slane %v109, 4
  %v111 = vadd.f32 %v109, %v110
  %v112 = vrot.slane %v111, 2
  %v113 = vadd.f32 %v111, %v112
  %v114 = vrot.slane %v113, 1
  %v115 = vadd.f32 %v113, %v114
  %v116 = vsel %vm52, %v45, 0.0
  %v117 = vrot.slane %v116, 4
  %v118 = vadd.f32 %v116, %v117
  %v119 = vrot.slane %v118, 2
  %v120 = vadd.f32 %v118, %v119
  %v121 = vrot.slane %v120, 1
  %v122 = vadd.f32 %v120, %v121
  %v123 = vsel %vm52, %v46, 0.0
  %v124 = vrot.slane %v123, 4
  %v125 = vadd.f32 %v123, %v124
  %v126 = vrot.slane %v125, 2
  %v127 = vadd.f32 %v125, %v126
  %v128 = vrot.slane %v127, 1
  %v129 = vadd.f32 %v127, %v128
  %v130 = vsel %vm52, %v47, 0.0
  %v131 = vrot.slane %v130, 4
  %v132 = vadd.f32 %v130, %v131
  %v133 = vrot.slane %v132, 2
  %v134 = vadd.f32 %v132, %v133
  %v135 = vrot.slane %v134, 1
  %v136 = vadd.f32 %v134, %v135
  %v137 = vsel %vm52, %v48, 0.0
  %v138 = vrot.slane %v137, 4
  %v139 = vadd.f32 %v137, %v138
  %v140 = vrot.slane %v139, 2
  %v141 = vadd.f32 %v139, %v140
  %v142 = vrot.slane %v141, 1
  %v143 = vadd.f32 %v141, %v142
  %v144 = vsel %vm52, %v49, 0.0
  %v145 = vrot.slane %v144, 4
  %v146 = vadd.f32 %v144, %v145
  %v147 = vrot.slane %v146, 2
  %v148 = vadd.f32 %v146, %v147
  %v149 = vrot.slane %v148, 1
  %v150 = vadd.f32 %v148, %v149
  %v151 = vsel %vm52, %v50, 0.0
  %v152 = vrot.slane %v151, 4
  %v153 = vadd.f32 %v151, %v152
  %v154 = vrot.slane %v153, 2
  %v155 = vadd.f32 %v153, %v154
  %v156 = vrot.slane %v155, 1
  %v157 = vadd.f32 %v155, %v156
  %v158 = vsel %vm52, %v51, 0.0
  %v159 = vrot.slane %v158, 4
  %v160 = vadd.f32 %v158, %v159
  %v161 = vrot.slane %v160, 2
  %v162 = vadd.f32 %v160, %v161
  %v163 = vrot.slane %v162, 1
  %v164 = vadd.f32 %v162, %v163
  %v165 = vrcp.pop 8.0
  %v166 = vmul.f32 %v59, %v165
  %v167 = vmul.f32 %v66, %v165
  %v168 = vmul.f32 %v73, %v165
  %v169 = vmul.f32 %v80, %v165
  %v170 = vmul.f32 %v87, %v165
  %v171 = vmul.f32 %v94, %v165
  %v172 = vmul.f32 %v101, %v165
  %v173 = vmul.f32 %v108, %v165
  %v174 = vmul.f32 %v115, %v165
  %v175 = vmul.f32 %v122, %v165
  %v176 = vmul.f32 %v129, %v165
  %v177 = vmul.f32 %v136, %v165
  %v178 = vmul.f32 %v143, %v165
  %v179 = vmul.f32 %v150, %v165
  %v180 = vmul.f32 %v157, %v165
  %v181 = vmul.f32 %v164, %v165
  %v182 = vld [vmem:[%s1] sm:$0xff]
  %v183 = vld [vmem:[%s1 + $0x8] sm:$0xff]
  %v184 = vld [vmem:[%s1 + $0x10] sm:$0xff]
  %v185 = vld [vmem:[%s1 + $0x18] sm:$0xff]
  %v186 = vld [vmem:[%s1 + $0x20] sm:$0xff]
  %v187 = vld [vmem:[%s1 + $0x28] sm:$0xff]
  %v188 = vld [vmem:[%s1 + $0x30] sm:$0xff]
  %v189 = vld [vmem:[%s1 + $0x38] sm:$0xff]
  %v190 = vld [vmem:[%s1 + $0x40] sm:$0xff]
  %v191 = vld [vmem:[%s1 + $0x48] sm:$0xff]
  %v192 = vld [vmem:[%s1 + $0x50] sm:$0xff]
  %v193 = vld [vmem:[%s1 + $0x58] sm:$0xff]
  %v194 = vld [vmem:[%s1 + $0x60] sm:$0xff]
  %v195 = vld [vmem:[%s1 + $0x68] sm:$0xff]
  %v196 = vld [vmem:[%s1 + $0x70] sm:$0xff]
  %v197 = vld [vmem:[%s1 + $0x78] sm:$0xff]
  %v198 = vsel %vm52, %v182, 0.0
  %v199 = vrot.slane %v198, 4
  %v200 = vadd.f32 %v198, %v199
  %v201 = vrot.slane %v200, 2
  %v202 = vadd.f32 %v200, %v201
  %v203 = vrot.slane %v202, 1
  %v204 = vadd.f32 %v202, %v203
  %v205 = vsel %vm52, %v183, 0.0
  %v206 = vrot.slane %v205, 4
  %v207 = vadd.f32 %v205, %v206
  %v208 = vrot.slane %v207, 2
  %v209 = vadd.f32 %v207, %v208
  %v210 = vrot.slane %v209, 1
  %v211 = vadd.f32 %v209, %v210
  %v212 = vsel %vm52, %v184, 0.0
  %v213 = vrot.slane %v212, 4
  %v214 = vadd.f32 %v212, %v213
  %v215 = vrot.slane %v214, 2
  %v216 = vadd.f32 %v214, %v215
  %v217 = vrot.slane %v216, 1
  %v218 = vadd.f32 %v216, %v217
  %v219 = vsel %vm52, %v185, 0.0
  %v220 = vrot.slane %v219, 4
  %v221 = vadd.f32 %v219, %v220
  %v222 = vrot.slane %v221, 2
  %v223 = vadd.f32 %v221, %v222
  %v224 = vrot.slane %v223, 1
  %v225 = vadd.f32 %v223, %v224
  %v226 = vsel %vm52, %v186, 0.0
  %v227 = vrot.slane %v226, 4
  %v228 = vadd.f32 %v226, %v227
  %v229 = vrot.slane %v228, 2
  %v230 = vadd.f32 %v228, %v229
  %v231 = vrot.slane %v230, 1
  %v232 = vadd.f32 %v230, %v231
  %v233 = vsel %vm52, %v187, 0.0
  %v234 = vrot.slane %v233, 4
  %v235 = vadd.f32 %v233, %v234
  %v236 = vrot.slane %v235, 2
  %v237 = vadd.f32 %v235, %v236
  %v238 = vrot.slane %v237, 1
  %v239 = vadd.f32 %v237, %v238
  %v240 = vsel %vm52, %v188, 0.0
  %v241 = vrot.slane %v240, 4
  %v242 = vadd.f32 %v240, %v241
  %v243 = vrot.slane %v242, 2
  %v244 = vadd.f32 %v242, %v243
  %v245 = vrot.slane %v244, 1
  %v246 = vadd.f32 %v244, %v245
  %v247 = vsel %vm52, %v189, 0.0
  %v248 = vrot.slane %v247, 4
  %v249 = vadd.f32 %v247, %v248
  %v250 = vrot.slane %v249, 2
  %v251 = vadd.f32 %v249, %v250
  %v252 = vrot.slane %v251, 1
  %v253 = vadd.f32 %v251, %v252
  %v254 = vsel %vm52, %v190, 0.0
  %v255 = vrot.slane %v254, 4
  %v256 = vadd.f32 %v254, %v255
  %v257 = vrot.slane %v256, 2
  %v258 = vadd.f32 %v256, %v257
  %v259 = vrot.slane %v258, 1
  %v260 = vadd.f32 %v258, %v259
  %v261 = vsel %vm52, %v191, 0.0
  %v262 = vrot.slane %v261, 4
  %v263 = vadd.f32 %v261, %v262
  %v264 = vrot.slane %v263, 2
  %v265 = vadd.f32 %v263, %v264
  %v266 = vrot.slane %v265, 1
  %v267 = vadd.f32 %v265, %v266
  %v268 = vsel %vm52, %v192, 0.0
  %v269 = vrot.slane %v268, 4
  %v270 = vadd.f32 %v268, %v269
  %v271 = vrot.slane %v270, 2
  %v272 = vadd.f32 %v270, %v271
  %v273 = vrot.slane %v272, 1
  %v274 = vadd.f32 %v272, %v273
  %v275 = vsel %vm52, %v193, 0.0
  %v276 = vrot.slane %v275, 4
  %v277 = vadd.f32 %v275, %v276
  %v278 = vrot.slane %v277, 2
  %v279 = vadd.f32 %v277, %v278
  %v280 = vrot.slane %v279, 1
  %v281 = vadd.f32 %v279, %v280
  %v282 = vsel %vm52, %v194, 0.0
  %v283 = vrot.slane %v282, 4
  %v284 = vadd.f32 %v282, %v283
  %v285 = vrot.slane %v284, 2
  %v286 = vadd.f32 %v284, %v285
  %v287 = vrot.slane %v286, 1
  %v288 = vadd.f32 %v286, %v287
  %v289 = vsel %vm52, %v195, 0.0
  %v290 = vrot.slane %v289, 4
  %v291 = vadd.f32 %v289, %v290
  %v292 = vrot.slane %v291, 2
  %v293 = vadd.f32 %v291, %v292
  %v294 = vrot.slane %v293, 1
  %v295 = vadd.f32 %v293, %v294
  %v296 = vsel %vm52, %v196, 0.0
  %v297 = vrot.slane %v296, 4
  %v298 = vadd.f32 %v296, %v297
  %v299 = vrot.slane %v298, 2
  %v300 = vadd.f32 %v298, %v299
  %v301 = vrot.slane %v300, 1
  %v302 = vadd.f32 %v300, %v301
  %v303 = vsel %vm52, %v197, 0.0
  %v304 = vrot.slane %v303, 4
  %v305 = vadd.f32 %v303, %v304
  %v306 = vrot.slane %v305, 2
  %v307 = vadd.f32 %v305, %v306
  %v308 = vrot.slane %v307, 1
  %v309 = vadd.f32 %v307, %v308
  %v310 = vmul.f32 %v204, %v165
  %v311 = vmul.f32 %v211, %v165
  %v312 = vmul.f32 %v218, %v165
  %v313 = vmul.f32 %v225, %v165
  %v314 = vmul.f32 %v232, %v165
  %v315 = vmul.f32 %v239, %v165
  %v316 = vmul.f32 %v246, %v165
  %v317 = vmul.f32 %v253, %v165
  %v318 = vmul.f32 %v260, %v165
  %v319 = vmul.f32 %v267, %v165
  %v320 = vmul.f32 %v274, %v165
  %v321 = vmul.f32 %v281, %v165
  %v322 = vmul.f32 %v288, %v165
  %v323 = vmul.f32 %v295, %v165
  %v324 = vmul.f32 %v302, %v165
  %v325 = vmul.f32 %v309, %v165
  %vm342 = vcmask 1041409
  %v343 = vsel %vm342, %v167, %v166
  %vm344 = vcmask 1042434
  %v345 = vsel %vm344, %v168, %v343
  %vm346 = vcmask 1043459
  %v347 = vsel %vm346, %v169, %v345
  %vm348 = vcmask 1044484
  %v349 = vsel %vm348, %v170, %v347
  %vm350 = vcmask 1045509
  %v351 = vsel %vm350, %v171, %v349
  %vm352 = vcmask 1046534
  %v353 = vsel %vm352, %v172, %v351
  %vm354 = vcmask 1047559
  %v355 = vsel %vm354, %v173, %v353
  %v356 = vsel %vm342, %v175, %v174
  %v357 = vsel %vm344, %v176, %v356
  %v358 = vsel %vm346, %v177, %v357
  %v359 = vsel %vm348, %v178, %v358
  %v360 = vsel %vm350, %v179, %v359
  %v361 = vsel %vm352, %v180, %v360
  %v362 = vsel %vm354, %v181, %v361
  %v379 = vsel %vm342, %v311, %v310
  %v380 = vsel %vm344, %v312, %v379
  %v381 = vsel %vm346, %v313, %v380
  %v382 = vsel %vm348, %v314, %v381
  %v383 = vsel %vm350, %v315, %v382
  %v384 = vsel %vm352, %v316, %v383
  %v385 = vsel %vm354, %v317, %v384
  %v386 = vsel %vm342, %v319, %v318
  %v387 = vsel %vm344, %v320, %v386
  %v388 = vsel %vm346, %v321, %v387
  %v389 = vsel %vm348, %v322, %v388
  %v390 = vsel %vm350, %v323, %v389
  %v391 = vsel %vm352, %v324, %v390
  %v392 = vsel %vm354, %v325, %v391
  %v393 = vrot.slane %v355, 6
  %v394 = vrot.slane %v362, 6
  %v395 = vrot.slane %v385, 6
  %v396 = vrot.slane %v392, 6
  %vm401 = vcmask 1041408
  %v402 = vsel %vm401, 0.0, %v393
  %v403 = vsel %vm401, 0.0, %v394
  %v404 = vsel %vm401, 0.0, %v395
  %v405 = vsel %vm401, 0.0, %v396
  %v406 = vsel %vm401, %v393, 0.0
  %v407 = vsel %vm401, %v394, 0.0
  %v408 = vsel %vm401, %v395, 0.0
  %v409 = vsel %vm401, %v396, 0.0
  %v410 = vld [vmem:[%s2] sm:$0xf]
  %v411 = vld [vmem:[%s2 + $0x4] sm:$0xf]
  %v412 = vld [vmem:[%s2 + $0x8] sm:$0xf]
  %v413 = vld [vmem:[%s2 + $0xc] sm:$0xf]
  %v414 = vld [vmem:[%s2 + $0x10] sm:$0xf]
  %v415 = vld [vmem:[%s2 + $0x14] sm:$0xf]
  %v416 = vld [vmem:[%s2 + $0x18] sm:$0xf]
  %v417 = vld [vmem:[%s2 + $0x1c] sm:$0xf]
  %v418 = vld [vmem:[%s2 + $0x20] sm:$0xf]
  %v419 = vld [vmem:[%s2 + $0x24] sm:$0xf]
  %v420 = vld [vmem:[%s2 + $0x28] sm:$0xf]
  %v421 = vld [vmem:[%s2 + $0x2c] sm:$0xf]
  %v422 = vld [vmem:[%s3] sm:$0x1]
  %v423 = vld [vmem:[%s4] sm:$0xf]
  %v424 = vld [vmem:[%s4 + $0x4] sm:$0xf]
  %v425 = vld [vmem:[%s4 + $0x8] sm:$0xf]
  %v426 = vld [vmem:[%s4 + $0xc] sm:$0xf]
  %v427 = vld [vmem:[%s4 + $0x10] sm:$0xf]
  %v428 = vld [vmem:[%s4 + $0x14] sm:$0xf]
  %v429 = vld [vmem:[%s4 + $0x18] sm:$0xf]
  %v430 = vld [vmem:[%s4 + $0x1c] sm:$0xf]
  %v431 = vld [vmem:[%s4 + $0x20] sm:$0xf]
  %v432 = vld [vmem:[%s4 + $0x24] sm:$0xf]
  %v433 = vld [vmem:[%s4 + $0x28] sm:$0xf]
  %v434 = vld [vmem:[%s4 + $0x2c] sm:$0xf]
  %v435 = vld [vmem:[%s5] sm:$0x1]
  %vm444 = vcmask 1046528
  %v445 = vrot.slane %v402, 1
  %v446 = vrot.slane %v406, 1
  %v447 = vsel %vm444, %v445, %v446
  %v448 = vrot.slane %v403, 1
  %v449 = vrot.slane %v407, 1
  %v450 = vsel %vm444, %v448, %v449
  %v451 = vrot.slane %v404, 1
  %v452 = vrot.slane %v408, 1
  %v453 = vsel %vm444, %v451, %v452
  %v454 = vrot.slane %v405, 1
  %v455 = vrot.slane %v409, 1
  %v456 = vsel %vm444, %v454, %v455
  %457 = vrot.lane.b32.xlu0 %v447, 32
  %v458 = vpop.permute.xlu0 %457
  %459 = vrot.lane.b32.xlu0 %v446, 32
  %v460 = vpop.permute.xlu0 %459
  %461 = vrot.lane.b32.xlu0 %v450, 32
  %v462 = vpop.permute.xlu0 %461
  %463 = vrot.lane.b32.xlu0 %v449, 32
  %v464 = vpop.permute.xlu0 %463
  %465 = vrot.lane.b32.xlu0 %v453, 32
  %v466 = vpop.permute.xlu0 %465
  %467 = vrot.lane.b32.xlu0 %v452, 32
  %v468 = vpop.permute.xlu0 %467
  %469 = vrot.lane.b32.xlu0 %v456, 32
  %v470 = vpop.permute.xlu0 %469
  %471 = vrot.lane.b32.xlu0 %v455, 32
  %v472 = vpop.permute.xlu0 %471
  %vm481 = vcmask 1045504
  %v482 = vrot.slane %v402, 2
  %v483 = vrot.slane %v406, 2
  %v484 = vsel %vm481, %v482, %v483
  %v485 = vrot.slane %v403, 2
  %v486 = vrot.slane %v407, 2
  %v487 = vsel %vm481, %v485, %v486
  %v488 = vrot.slane %v404, 2
  %v489 = vrot.slane %v408, 2
  %v490 = vsel %vm481, %v488, %v489
  %v491 = vrot.slane %v405, 2
  %v492 = vrot.slane %v409, 2
  %v493 = vsel %vm481, %v491, %v492
  %494 = vrot.lane.b32.xlu0 %v484, 64
  %v495 = vpop.permute.xlu0 %494
  %496 = vrot.lane.b32.xlu0 %v483, 64
  %v497 = vpop.permute.xlu0 %496
  %498 = vrot.lane.b32.xlu0 %v487, 64
  %v499 = vpop.permute.xlu0 %498
  %500 = vrot.lane.b32.xlu0 %v486, 64
  %v501 = vpop.permute.xlu0 %500
  %502 = vrot.lane.b32.xlu0 %v490, 64
  %v503 = vpop.permute.xlu0 %502
  %504 = vrot.lane.b32.xlu0 %v489, 64
  %v505 = vpop.permute.xlu0 %504
  %506 = vrot.lane.b32.xlu0 %v493, 64
  %v507 = vpop.permute.xlu0 %506
  %508 = vrot.lane.b32.xlu0 %v492, 64
  %v509 = vpop.permute.xlu0 %508
  %v518 = vsel %vm52, %v402, %v458
  %v519 = vsel %vm52, %v406, %v460
  %v520 = vsel %vm52, %v403, %v462
  %v521 = vsel %vm52, %v407, %v464
  %v522 = vsel %vm52, %v404, %v466
  %v523 = vsel %vm52, %v408, %v468
  %v524 = vsel %vm52, %v405, %v470
  %v525 = vsel %vm52, %v409, %v472
  %vm526 = vcmask 523264
  %v527 = vsel %vm526, %v518, %v495
  %v528 = vsel %vm526, %v519, %v497
  %v529 = vsel %vm526, %v520, %v499
  %v530 = vsel %vm526, %v521, %v501
  %v531 = vsel %vm526, %v522, %v503
  %v532 = vsel %vm526, %v523, %v505
  %v533 = vsel %vm526, %v524, %v507
  %v534 = vsel %vm526, %v525, %v509
  %v543 = vrot.slane %v527, 1
  %v544 = vrot.slane %v528, 1
  %v545 = vsel %vm444, %v543, %v544
  %v546 = vrot.slane %v529, 1
  %v547 = vrot.slane %v530, 1
  %v548 = vsel %vm444, %v546, %v547
  %v549 = vrot.slane %v531, 1
  %v550 = vrot.slane %v532, 1
  %v551 = vsel %vm444, %v549, %v550
  %v552 = vrot.slane %v533, 1
  %v553 = vrot.slane %v534, 1
  %v554 = vsel %vm444, %v552, %v553
  %v559 = vpack.c.bf16 %v548, %v545
  %v560 = vpack.c.bf16 %v554, %v551
  %v562 = vlaneseq
  %v563 = vshrl.u32 %v562, 7
  %v564 = vsub.s32 0, %v563
  %v565 = vrot.slane %v422, %v564
  %v579 = vunpack.c.l.b16 %v410
  %v580 = vunpack.c.l.b16 %v411
  %v581 = vunpack.c.l.b16 %v412
  %v582 = vunpack.c.l.b16 %v413
  %v583 = vunpack.c.l.b16 %v414
  %v584 = vunpack.c.l.b16 %v415
  %v585 = vunpack.c.l.b16 %v416
  %v586 = vunpack.c.l.b16 %v417
  %v587 = vunpack.c.l.b16 %v418
  %v588 = vunpack.c.l.b16 %v419
  %v589 = vunpack.c.l.b16 %v420
  %v590 = vunpack.c.l.b16 %v421
  %v591 = vpack.c.b16 %v580, %v579
  %v592 = vpack.c.b16 %v582, %v581
  %v593 = vpack.c.b16 %v584, %v583
  %v594 = vpack.c.b16 %v586, %v585
  %v595 = vpack.c.b16 %v588, %v587
  %v596 = vpack.c.b16 %v590, %v589
  %vm603 = vcmask 785408
  %v605 = vsel %vm603, %v559, 0
  %v608 = vsel %vm603, %v560, 0
  %610 = vmatprep.subr.bf16.mxu0 0
  %611 = vmatpush1.bf16.msra.mxu0 %v591
  %612 = vmatprep.subr.bf16.mxu0 0
  %613 = vmatpush1.bf16.msra.mxu0 %v592
  %614 = vmatprep.subr.bf16.mxu0 0
  %615 = vmatpush1.bf16.msra.mxu0 %v593
  %616 = vmatprep.subr.bf16.mxu0 0
  %617 = vmatpush1.bf16.msra.mxu0 %v594
  %618 = vmatprep.subr.bf16.mxu0 0
  %619 = vmatpush1.bf16.msra.mxu0 %v595
  %620 = vmatprep.subr.bf16.mxu0 0
  %621 = vmatpush1.bf16.msra.mxu0 %v596
  %622 = vmatprep.subr.bf16.mxu0 0
  %623 = vmatpush1.bf16.msra.mxu0 0
  %624 = vmatprep.subr.bf16.mxu0 0
  %625 = vmatpush1.bf16.msra.mxu0 0
  %626 = vmatprep.subr.bf16.mxu0 0
  %627 = vmatpush1.bf16.msra.mxu0 0
  %628 = vmatprep.subr.bf16.mxu0 0
  %629 = vmatpush1.bf16.msra.mxu0 0
  %630 = vmatprep.subr.bf16.mxu0 0
  %631 = vmatpush1.bf16.msra.mxu0 0
  %632 = vmatprep.subr.bf16.mxu0 0
  %633 = vmatpush1.bf16.msra.mxu0 0
  %634 = vmatprep.subr.bf16.mxu0 0
  %635 = vmatpush1.bf16.msra.mxu0 0
  %636 = vmatprep.subr.bf16.mxu0 0
  %637 = vmatpush1.bf16.msra.mxu0 0
  %638 = vmatprep.subr.bf16.mxu0 0
  %639 = vmatpush1.bf16.msra.mxu0 0
  %640 = vmatprep.subr.bf16.mxu0 0
  %641 = vmatpush1.bf16.msra.mxu0 0
  %642 = vmatprep.mubr.bf16.mxu0 0
  %643 = vmatmul.mubr.bf16.gmra.mrb[0].mxu0 %v605
  %v644 = vpop.f32.mrb[0].mxu0
  %v645 = vadd.f32 %v565, %v644
  %v646 = vpop.f32.mrb[0].mxu0
  %v647 = vpop.f32.mrb[0].mxu0
  %v648 = vadd.f32 %v565, %v647
  %v649 = vpop.f32.mrb[0].mxu0
  %650 = vmatprep.mubr.bf16.mxu0 0
  %651 = vmatmul.mubr.bf16.gmra.mrb[0].mxu0 %v608
  %v652 = vpop.f32.mrb[0].mxu0
  %v653 = vadd.f32 %v565, %v652
  %v654 = vpop.f32.mrb[0].mxu0
  %v655 = vpop.f32.mrb[0].mxu0
  %v656 = vadd.f32 %v565, %v655
  %v657 = vpop.f32.mrb[0].mxu0
  %658 = vdwg.mxu0
  %v659 = vmax.f32 %v645, 0.0
  %v660 = vmax.f32 %v648, 0.0
  %v661 = vmax.f32 %v653, 0.0
  %v662 = vmax.f32 %v656, 0.0
  %v667 = vrot.slane %v659, 1
  %v668 = vrot.slane %v660, 1
  %v669 = vrot.slane %v661, 1
  %v670 = vrot.slane %v662, 1
  %v675 = vmax.f32 %v659, %v667
  %v676 = vmax.f32 %v660, %v668
  %v677 = vmax.f32 %v661, %v669
  %v678 = vmax.f32 %v662, %v670
  %v683 = vrot.slane %v675, 7
  %v684 = vrot.slane %v676, 7
  %v685 = vrot.slane %v677, 7
  %v686 = vrot.slane %v678, 7
  %vm691 = vcmask 1040384
  %v692 = vsel %vm691, 0.0, %v683
  %v693 = vsel %vm691, 0.0, %v684
  %v694 = vsel %vm691, 0.0, %v685
  %v695 = vsel %vm691, 0.0, %v686
  %v700 = vrot.slane %v692, 1
  %v701 = vrot.slane %v693, 1
  %v702 = vrot.slane %v694, 1
  %v703 = vrot.slane %v695, 1
  %704 = vrot.lane.b32.xlu0 %v700, 32
  %v705 = vpop.permute.xlu0 %704
  %706 = vrot.lane.b32.xlu0 %v701, 32
  %v707 = vpop.permute.xlu0 %706
  %708 = vrot.lane.b32.xlu0 %v702, 32
  %v709 = vpop.permute.xlu0 %708
  %710 = vrot.lane.b32.xlu0 %v703, 32
  %v711 = vpop.permute.xlu0 %710
  %v717 = vrot.slane %v692, 2
  %v718 = vrot.slane 0.0, 2
  %v719 = vsel %vm481, %v717, %v718
  %v720 = vrot.slane %v693, 2
  %v721 = vsel %vm481, %v720, %v718
  %v722 = vrot.slane %v694, 2
  %v723 = vsel %vm481, %v722, %v718
  %v724 = vrot.slane %v695, 2
  %v725 = vsel %vm481, %v724, %v718
  %726 = vrot.lane.b32.xlu0 %v719, 64
  %v727 = vpop.permute.xlu0 %726
  %728 = vrot.lane.b32.xlu0 %v721, 64
  %v729 = vpop.permute.xlu0 %728
  %730 = vrot.lane.b32.xlu0 %v723, 64
  %v731 = vpop.permute.xlu0 %730
  %732 = vrot.lane.b32.xlu0 %v725, 64
  %v733 = vpop.permute.xlu0 %732
  %v738 = vsel %vm52, %v692, %v705
  %v739 = vsel %vm52, %v693, %v707
  %v740 = vsel %vm52, %v694, %v709
  %v741 = vsel %vm52, %v695, %v711
  %v742 = vsel %vm526, %v738, %v727
  %v743 = vsel %vm526, %v739, %v729
  %v744 = vsel %vm526, %v740, %v731
  %v745 = vsel %vm526, %v741, %v733
  %v750 = vcombine.high %v742, %v742
  %v752 = vunpack.c.l.s4 1966171168
  %v753 = vunpack.c.0.s8 %v752
  %v754 = vlaneseq
  %v755 = vshrl.u32 %v754, 7
  %v756 = vsub.s32 %v753, %v755
  %v757 = vrot.slane %v742, %v756
  %v759 = vunpack.c.l.s4 1966171168
  %v760 = vunpack.c.0.s8 %v759
  %v761 = vlaneseq
  %v762 = vshrl.u32 %v761, 7
  %v763 = vsub.s32 %v760, %v762
  %v764 = vrot.slane %v750, %v763
  %v765 = vcombine.high %v757, %v757
  %v766 = vcombine.high %v764, %v764
  %v768 = vunpack.c.l.s4 1966171168
  %v769 = vunpack.c.0.s8 %v768
  %v770 = vlaneseq
  %v771 = vshrl.u32 %v770, 7
  %v772 = vsub.s32 %v769, %v771
  %v773 = vrot.slane %v757, %v772
  %v775 = vunpack.c.l.s4 1966171168
  %v776 = vunpack.c.0.s8 %v775
  %v777 = vlaneseq
  %v778 = vshrl.u32 %v777, 7
  %v779 = vsub.s32 %v776, %v778
  %v780 = vrot.slane %v764, %v779
  %v782 = vunpack.c.l.s4 1966171168
  %v783 = vunpack.c.0.s8 %v782
  %v784 = vlaneseq
  %v785 = vshrl.u32 %v784, 7
  %v786 = vsub.s32 %v783, %v785
  %v787 = vrot.slane %v765, %v786
  %v789 = vunpack.c.l.s4 1966171168
  %v790 = vunpack.c.0.s8 %v789
  %v791 = vlaneseq
  %v792 = vshrl.u32 %v791, 7
  %v793 = vsub.s32 %v790, %v792
  %v794 = vrot.slane %v766, %v793
  %v795 = vcombine.high %v773, %v773
  %v796 = vcombine.high %v780, %v780
  %v797 = vcombine.high %v787, %v787
  %v798 = vcombine.high %v743, %v743
  %v800 = vunpack.c.l.s4 1966171168
  %v801 = vunpack.c.0.s8 %v800
  %v802 = vlaneseq
  %v803 = vshrl.u32 %v802, 7
  %v804 = vsub.s32 %v801, %v803
  %v805 = vrot.slane %v743, %v804
  %v807 = vunpack.c.l.s4 1966171168
  %v808 = vunpack.c.0.s8 %v807
  %v809 = vlaneseq
  %v810 = vshrl.u32 %v809, 7
  %v811 = vsub.s32 %v808, %v810
  %v812 = vrot.slane %v798, %v811
  %v813 = vcombine.high %v805, %v805
  %v814 = vcombine.high %v812, %v812
  %v816 = vunpack.c.l.s4 1966171168
  %v817 = vunpack.c.0.s8 %v816
  %v818 = vlaneseq
  %v819 = vshrl.u32 %v818, 7
  %v820 = vsub.s32 %v817, %v819
  %v821 = vrot.slane %v805, %v820
  %v823 = vunpack.c.l.s4 1966171168
  %v824 = vunpack.c.0.s8 %v823
  %v825 = vlaneseq
  %v826 = vshrl.u32 %v825, 7
  %v827 = vsub.s32 %v824, %v826
  %v828 = vrot.slane %v812, %v827
  %v830 = vunpack.c.l.s4 1966171168
  %v831 = vunpack.c.0.s8 %v830
  %v832 = vlaneseq
  %v833 = vshrl.u32 %v832, 7
  %v834 = vsub.s32 %v831, %v833
  %v835 = vrot.slane %v813, %v834
  %v837 = vunpack.c.l.s4 1966171168
  %v838 = vunpack.c.0.s8 %v837
  %v839 = vlaneseq
  %v840 = vshrl.u32 %v839, 7
  %v841 = vsub.s32 %v838, %v840
  %v842 = vrot.slane %v814, %v841
  %v843 = vcombine.high %v821, %v821
  %v844 = vcombine.high %v828, %v828
  %v845 = vcombine.high %v835, %v835
  %v846 = vcombine.high %v744, %v744
  %v848 = vunpack.c.l.s4 1966171168
  %v849 = vunpack.c.0.s8 %v848
  %v850 = vlaneseq
  %v851 = vshrl.u32 %v850, 7
  %v852 = vsub.s32 %v849, %v851
  %v853 = vrot.slane %v744, %v852
  %v855 = vunpack.c.l.s4 1966171168
  %v856 = vunpack.c.0.s8 %v855
  %v857 = vlaneseq
  %v858 = vshrl.u32 %v857, 7
  %v859 = vsub.s32 %v856, %v858
  %v860 = vrot.slane %v846, %v859
  %v861 = vcombine.high %v853, %v853
  %v862 = vcombine.high %v860, %v860
  %v864 = vunpack.c.l.s4 1966171168
  %v865 = vunpack.c.0.s8 %v864
  %v866 = vlaneseq
  %v867 = vshrl.u32 %v866, 7
  %v868 = vsub.s32 %v865, %v867
  %v869 = vrot.slane %v853, %v868
  %v871 = vunpack.c.l.s4 1966171168
  %v872 = vunpack.c.0.s8 %v871
  %v873 = vlaneseq
  %v874 = vshrl.u32 %v873, 7
  %v875 = vsub.s32 %v872, %v874
  %v876 = vrot.slane %v860, %v875
  %v878 = vunpack.c.l.s4 1966171168
  %v879 = vunpack.c.0.s8 %v878
  %v880 = vlaneseq
  %v881 = vshrl.u32 %v880, 7
  %v882 = vsub.s32 %v879, %v881
  %v883 = vrot.slane %v861, %v882
  %v885 = vunpack.c.l.s4 1966171168
  %v886 = vunpack.c.0.s8 %v885
  %v887 = vlaneseq
  %v888 = vshrl.u32 %v887, 7
  %v889 = vsub.s32 %v886, %v888
  %v890 = vrot.slane %v862, %v889
  %v891 = vcombine.high %v869, %v869
  %v892 = vcombine.high %v876, %v876
  %v893 = vcombine.high %v883, %v883
  %v894 = vcombine.high %v745, %v745
  %v896 = vunpack.c.l.s4 1966171168
  %v897 = vunpack.c.0.s8 %v896
  %v898 = vlaneseq
  %v899 = vshrl.u32 %v898, 7
  %v900 = vsub.s32 %v897, %v899
  %v901 = vrot.slane %v745, %v900
  %v903 = vunpack.c.l.s4 1966171168
  %v904 = vunpack.c.0.s8 %v903
  %v905 = vlaneseq
  %v906 = vshrl.u32 %v905, 7
  %v907 = vsub.s32 %v904, %v906
  %v908 = vrot.slane %v894, %v907
  %v909 = vcombine.high %v901, %v901
  %v910 = vcombine.high %v908, %v908
  %v912 = vunpack.c.l.s4 1966171168
  %v913 = vunpack.c.0.s8 %v912
  %v914 = vlaneseq
  %v915 = vshrl.u32 %v914, 7
  %v916 = vsub.s32 %v913, %v915
  %v917 = vrot.slane %v901, %v916
  %v919 = vunpack.c.l.s4 1966171168
  %v920 = vunpack.c.0.s8 %v919
  %v921 = vlaneseq
  %v922 = vshrl.u32 %v921, 7
  %v923 = vsub.s32 %v920, %v922
  %v924 = vrot.slane %v908, %v923
  %v926 = vunpack.c.l.s4 1966171168
  %v927 = vunpack.c.0.s8 %v926
  %v928 = vlaneseq
  %v929 = vshrl.u32 %v928, 7
  %v930 = vsub.s32 %v927, %v929
  %v931 = vrot.slane %v909, %v930
  %v933 = vunpack.c.l.s4 1966171168
  %v934 = vunpack.c.0.s8 %v933
  %v935 = vlaneseq
  %v936 = vshrl.u32 %v935, 7
  %v937 = vsub.s32 %v934, %v936
  %v938 = vrot.slane %v910, %v937
  %v939 = vcombine.high %v917, %v917
  %v940 = vcombine.high %v924, %v924
  %v941 = vcombine.high %v931, %v931
  %v942 = vcombine.low %v773, %v787
  %v943 = vcombine.low %v795, %v797
  %v944 = vcombine.low %v780, %v794
  %v945 = vcombine.low %v796, %v821
  %v947 = vunpack.c.l.s4 1966171168
  %v948 = vunpack.c.0.s8 %v947
  %v949 = vlaneseq
  %v950 = vshrl.u32 %v949, 7
  %v951 = vsub.s32 %v948, %v950
  %v952 = vrot.slane %v942, %v951
  %v954 = vunpack.c.l.s4 1966171168
  %v955 = vunpack.c.0.s8 %v954
  %v956 = vlaneseq
  %v957 = vshrl.u32 %v956, 7
  %v958 = vsub.s32 %v955, %v957
  %v959 = vrot.slane %v943, %v958
  %v961 = vunpack.c.l.s4 1966171168
  %v962 = vunpack.c.0.s8 %v961
  %v963 = vlaneseq
  %v964 = vshrl.u32 %v963, 7
  %v965 = vsub.s32 %v962, %v964
  %v966 = vrot.slane %v944, %v965
  %v968 = vunpack.c.l.s4 1966171168
  %v969 = vunpack.c.0.s8 %v968
  %v970 = vlaneseq
  %v971 = vshrl.u32 %v970, 7
  %v972 = vsub.s32 %v969, %v971
  %v973 = vrot.slane %v945, %v972
  %v974 = vcombine.low %v952, %v959
  %v975 = vcombine.low %v966, %v973
  %v977 = vunpack.c.l.s4 1966171168
  %v978 = vunpack.c.0.s8 %v977
  %v979 = vlaneseq
  %v980 = vshrl.u32 %v979, 7
  %v981 = vsub.s32 %v978, %v980
  %v982 = vrot.slane %v974, %v981
  %v984 = vunpack.c.l.s4 1966171168
  %v985 = vunpack.c.0.s8 %v984
  %v986 = vlaneseq
  %v987 = vshrl.u32 %v986, 7
  %v988 = vsub.s32 %v985, %v987
  %v989 = vrot.slane %v975, %v988
  %v990 = vcombine.low %v982, %v989
  %v991 = vcombine.low %v835, %v843
  %v992 = vcombine.low %v845, %v828
  %v993 = vcombine.low %v842, %v844
  %v994 = vcombine.low %v869, %v883
  %v996 = vunpack.c.l.s4 1966171168
  %v997 = vunpack.c.0.s8 %v996
  %v998 = vlaneseq
  %v999 = vshrl.u32 %v998, 7
  %v1000 = vsub.s32 %v997, %v999
  %v1001 = vrot.slane %v991, %v1000
  %v1003 = vunpack.c.l.s4 1966171168
  %v1004 = vunpack.c.0.s8 %v1003
  %v1005 = vlaneseq
  %v1006 = vshrl.u32 %v1005, 7
  %v1007 = vsub.s32 %v1004, %v1006
  %v1008 = vrot.slane %v992, %v1007
  %v1010 = vunpack.c.l.s4 1966171168
  %v1011 = vunpack.c.0.s8 %v1010
  %v1012 = vlaneseq
  %v1013 = vshrl.u32 %v1012, 7
  %v1014 = vsub.s32 %v1011, %v1013
  %v1015 = vrot.slane %v993, %v1014
  %v1017 = vunpack.c.l.s4 1966171168
  %v1018 = vunpack.c.0.s8 %v1017
  %v1019 = vlaneseq
  %v1020 = vshrl.u32 %v1019, 7
  %v1021 = vsub.s32 %v1018, %v1020
  %v1022 = vrot.slane %v994, %v1021
  %v1023 = vcombine.low %v1001, %v1008
  %v1024 = vcombine.low %v1015, %v1022
  %v1026 = vunpack.c.l.s4 1966171168
  %v1027 = vunpack.c.0.s8 %v1026
  %v1028 = vlaneseq
  %v1029 = vshrl.u32 %v1028, 7
  %v1030 = vsub.s32 %v1027, %v1029
  %v1031 = vrot.slane %v1023, %v1030
  %v1033 = vunpack.c.l.s4 1966171168
  %v1034 = vunpack.c.0.s8 %v1033
  %v1035 = vlaneseq
  %v1036 = vshrl.u32 %v1035, 7
  %v1037 = vsub.s32 %v1034, %v1036
  %v1038 = vrot.slane %v1024, %v1037
  %v1039 = vcombine.low %v1031, %v1038
  %v1040 = vcombine.low %v891, %v893
  %v1041 = vcombine.low %v876, %v890
  %v1042 = vcombine.low %v892, %v917
  %v1043 = vcombine.low %v931, %v939
  %v1045 = vunpack.c.l.s4 1966171168
  %v1046 = vunpack.c.0.s8 %v1045
  %v1047 = vlaneseq
  %v1048 = vshrl.u32 %v1047, 7
  %v1049 = vsub.s32 %v1046, %v1048
  %v1050 = vrot.slane %v1040, %v1049
  %v1052 = vunpack.c.l.s4 1966171168
  %v1053 = vunpack.c.0.s8 %v1052
  %v1054 = vlaneseq
  %v1055 = vshrl.u32 %v1054, 7
  %v1056 = vsub.s32 %v1053, %v1055
  %v1057 = vrot.slane %v1041, %v1056
  %v1059 = vunpack.c.l.s4 1966171168
  %v1060 = vunpack.c.0.s8 %v1059
  %v1061 = vlaneseq
  %v1062 = vshrl.u32 %v1061, 7
  %v1063 = vsub.s32 %v1060, %v1062
  %v1064 = vrot.slane %v1042, %v1063
  %v1066 = vunpack.c.l.s4 1966171168
  %v1067 = vunpack.c.0.s8 %v1066
  %v1068 = vlaneseq
  %v1069 = vshrl.u32 %v1068, 7
  %v1070 = vsub.s32 %v1067, %v1069
  %v1071 = vrot.slane %v1043, %v1070
  %v1072 = vcombine.low %v1050, %v1057
  %v1073 = vcombine.low %v1064, %v1071
  %v1075 = vunpack.c.l.s4 1966171168
  %v1076 = vunpack.c.0.s8 %v1075
  %v1077 = vlaneseq
  %v1078 = vshrl.u32 %v1077, 7
  %v1079 = vsub.s32 %v1076, %v1078
  %v1080 = vrot.slane %v1072, %v1079
  %v1082 = vunpack.c.l.s4 1966171168
  %v1083 = vunpack.c.0.s8 %v1082
  %v1084 = vlaneseq
  %v1085 = vshrl.u32 %v1084, 7
  %v1086 = vsub.s32 %v1083, %v1085
  %v1087 = vrot.slane %v1073, %v1086
  %v1088 = vcombine.low %v1080, %v1087
  %v1089 = vcombine.low %v941, %v924
  %v1090 = vcombine.low %v938, %v940
  %v1092 = vunpack.c.l.s4 1966171168
  %v1093 = vunpack.c.0.s8 %v1092
  %v1094 = vlaneseq
  %v1095 = vshrl.u32 %v1094, 7
  %v1096 = vsub.s32 %v1093, %v1095
  %v1097 = vrot.slane %v1089, %v1096
  %v1099 = vunpack.c.l.s4 1966171168
  %v1100 = vunpack.c.0.s8 %v1099
  %v1101 = vlaneseq
  %v1102 = vshrl.u32 %v1101, 7
  %v1103 = vsub.s32 %v1100, %v1102
  %v1104 = vrot.slane %v1090, %v1103
  %v1105 = vcombine.low %v1097, %v1104
  %v1107 = vunpack.c.l.s4 1966171168
  %v1108 = vunpack.c.0.s8 %v1107
  %v1109 = vlaneseq
  %v1110 = vshrl.u32 %v1109, 7
  %v1111 = vsub.s32 %v1108, %v1110
  %v1112 = vrot.slane %v1105, %v1111
  %v1117 = vpack.c.bf16 %v1039, %v990
  %v1118 = vpack.c.bf16 %v1112, %v1088
  %v1120 = vlaneseq
  %v1121 = vshrl.u32 %v1120, 7
  %v1122 = vsub.s32 0, %v1121
  %v1123 = vrot.slane %v435, %v1122
  %v1137 = vunpack.c.l.b16 %v423
  %v1138 = vunpack.c.l.b16 %v424
  %v1139 = vunpack.c.l.b16 %v425
  %v1140 = vunpack.c.l.b16 %v426
  %v1141 = vunpack.c.l.b16 %v427
  %v1142 = vunpack.c.l.b16 %v428
  %v1143 = vunpack.c.l.b16 %v429
  %v1144 = vunpack.c.l.b16 %v430
  %v1145 = vunpack.c.l.b16 %v431
  %v1146 = vunpack.c.l.b16 %v432
  %v1147 = vunpack.c.l.b16 %v433
  %v1148 = vunpack.c.l.b16 %v434
  %v1149 = vpack.c.b16 %v1138, %v1137
  %v1150 = vpack.c.b16 %v1140, %v1139
  %v1151 = vpack.c.b16 %v1142, %v1141
  %v1152 = vpack.c.b16 %v1144, %v1143
  %v1153 = vpack.c.b16 %v1146, %v1145
  %v1154 = vpack.c.b16 %v1148, %v1147
  %v1162 = vsel %vm603, %v1117, 0
  %v1165 = vsel %vm603, %v1118, 0
  %1167 = vmatprep.subr.bf16.mxu0 0
  %1168 = vmatpush1.bf16.msra.mxu0 %v1149
  %1169 = vmatprep.subr.bf16.mxu0 0
  %1170 = vmatpush1.bf16.msra.mxu0 %v1150
  %1171 = vmatprep.subr.bf16.mxu0 0
  %1172 = vmatpush1.bf16.msra.mxu0 %v1151
  %1173 = vmatprep.subr.bf16.mxu0 0
  %1174 = vmatpush1.bf16.msra.mxu0 %v1152
  %1175 = vmatprep.subr.bf16.mxu0 0
  %1176 = vmatpush1.bf16.msra.mxu0 %v1153
  %1177 = vmatprep.subr.bf16.mxu0 0
  %1178 = vmatpush1.bf16.msra.mxu0 %v1154
  %1179 = vmatprep.subr.bf16.mxu0 0
  %1180 = vmatpush1.bf16.msra.mxu0 0
  %1181 = vmatprep.subr.bf16.mxu0 0
  %1182 = vmatpush1.bf16.msra.mxu0 0
  %1183 = vmatprep.subr.bf16.mxu0 0
  %1184 = vmatpush1.bf16.msra.mxu0 0
  %1185 = vmatprep.subr.bf16.mxu0 0
  %1186 = vmatpush1.bf16.msra.mxu0 0
  %1187 = vmatprep.subr.bf16.mxu0 0
  %1188 = vmatpush1.bf16.msra.mxu0 0
  %1189 = vmatprep.subr.bf16.mxu0 0
  %1190 = vmatpush1.bf16.msra.mxu0 0
  %1191 = vmatprep.subr.bf16.mxu0 0
  %1192 = vmatpush1.bf16.msra.mxu0 0
  %1193 = vmatprep.subr.bf16.mxu0 0
  %1194 = vmatpush1.bf16.msra.mxu0 0
  %1195 = vmatprep.subr.bf16.mxu0 0
  %1196 = vmatpush1.bf16.msra.mxu0 0
  %1197 = vmatprep.subr.bf16.mxu0 0
  %1198 = vmatpush1.bf16.msra.mxu0 0
  %1199 = vmatprep.mubr.bf16.mxu0 0
  %1200 = vmatmul.mubr.bf16.gmra.mrb[0].mxu0 %v1162
  %v1201 = vpop.f32.mrb[0].mxu0
  %v1202 = vadd.f32 %v1123, %v1201
  %v1203 = vpop.f32.mrb[0].mxu0
  %v1204 = vpop.f32.mrb[0].mxu0
  %v1205 = vadd.f32 %v1123, %v1204
  %v1206 = vpop.f32.mrb[0].mxu0
  %1207 = vmatprep.mubr.bf16.mxu0 0
  %1208 = vmatmul.mubr.bf16.gmra.mrb[0].mxu0 %v1165
  %v1209 = vpop.f32.mrb[0].mxu0
  %v1210 = vadd.f32 %v1123, %v1209
  %v1211 = vpop.f32.mrb[0].mxu0
  %v1212 = vpop.f32.mrb[0].mxu0
  %v1213 = vadd.f32 %v1123, %v1212
  %v1214 = vpop.f32.mrb[0].mxu0
  %1215 = vdwg.mxu0
  %v1216 = vmax.f32 %v1202, 0.0
  %v1217 = vmax.f32 %v1205, 0.0
  %v1218 = vmax.f32 %v1210, 0.0
  %v1219 = vmax.f32 %v1213, 0.0
  %v1224 = vcombine.high %v1216, %v1216
  %v1226 = vunpack.c.l.s4 1966171168
  %v1227 = vunpack.c.0.s8 %v1226
  %v1228 = vlaneseq
  %v1229 = vshrl.u32 %v1228, 7
  %v1230 = vsub.s32 %v1227, %v1229
  %v1231 = vrot.slane %v1216, %v1230
  %v1233 = vunpack.c.l.s4 1966171168
  %v1234 = vunpack.c.0.s8 %v1233
  %v1235 = vlaneseq
  %v1236 = vshrl.u32 %v1235, 7
  %v1237 = vsub.s32 %v1234, %v1236
  %v1238 = vrot.slane %v1224, %v1237
  %v1239 = vcombine.high %v1231, %v1231
  %v1240 = vcombine.high %v1238, %v1238
  %v1242 = vunpack.c.l.s4 1966171168
  %v1243 = vunpack.c.0.s8 %v1242
  %v1244 = vlaneseq
  %v1245 = vshrl.u32 %v1244, 7
  %v1246 = vsub.s32 %v1243, %v1245
  %v1247 = vrot.slane %v1231, %v1246
  %v1249 = vunpack.c.l.s4 1966171168
  %v1250 = vunpack.c.0.s8 %v1249
  %v1251 = vlaneseq
  %v1252 = vshrl.u32 %v1251, 7
  %v1253 = vsub.s32 %v1250, %v1252
  %v1254 = vrot.slane %v1238, %v1253
  %v1256 = vunpack.c.l.s4 1966171168
  %v1257 = vunpack.c.0.s8 %v1256
  %v1258 = vlaneseq
  %v1259 = vshrl.u32 %v1258, 7
  %v1260 = vsub.s32 %v1257, %v1259
  %v1261 = vrot.slane %v1239, %v1260
  %v1263 = vunpack.c.l.s4 1966171168
  %v1264 = vunpack.c.0.s8 %v1263
  %v1265 = vlaneseq
  %v1266 = vshrl.u32 %v1265, 7
  %v1267 = vsub.s32 %v1264, %v1266
  %v1268 = vrot.slane %v1240, %v1267
  %v1269 = vcombine.high %v1247, %v1247
  %v1270 = vcombine.high %v1254, %v1254
  %v1271 = vcombine.high %v1261, %v1261
  %v1272 = vcombine.high %v1268, %v1268
  %v1273 = vcombine.high %v1217, %v1217
  %v1275 = vunpack.c.l.s4 1966171168
  %v1276 = vunpack.c.0.s8 %v1275
  %v1277 = vlaneseq
  %v1278 = vshrl.u32 %v1277, 7
  %v1279 = vsub.s32 %v1276, %v1278
  %v1280 = vrot.slane %v1217, %v1279
  %v1282 = vunpack.c.l.s4 1966171168
  %v1283 = vunpack.c.0.s8 %v1282
  %v1284 = vlaneseq
  %v1285 = vshrl.u32 %v1284, 7
  %v1286 = vsub.s32 %v1283, %v1285
  %v1287 = vrot.slane %v1273, %v1286
  %v1288 = vcombine.high %v1280, %v1280
  %v1289 = vcombine.high %v1287, %v1287
  %v1291 = vunpack.c.l.s4 1966171168
  %v1292 = vunpack.c.0.s8 %v1291
  %v1293 = vlaneseq
  %v1294 = vshrl.u32 %v1293, 7
  %v1295 = vsub.s32 %v1292, %v1294
  %v1296 = vrot.slane %v1280, %v1295
  %v1298 = vunpack.c.l.s4 1966171168
  %v1299 = vunpack.c.0.s8 %v1298
  %v1300 = vlaneseq
  %v1301 = vshrl.u32 %v1300, 7
  %v1302 = vsub.s32 %v1299, %v1301
  %v1303 = vrot.slane %v1287, %v1302
  %v1305 = vunpack.c.l.s4 1966171168
  %v1306 = vunpack.c.0.s8 %v1305
  %v1307 = vlaneseq
  %v1308 = vshrl.u32 %v1307, 7
  %v1309 = vsub.s32 %v1306, %v1308
  %v1310 = vrot.slane %v1288, %v1309
  %v1312 = vunpack.c.l.s4 1966171168
  %v1313 = vunpack.c.0.s8 %v1312
  %v1314 = vlaneseq
  %v1315 = vshrl.u32 %v1314, 7
  %v1316 = vsub.s32 %v1313, %v1315
  %v1317 = vrot.slane %v1289, %v1316
  %v1318 = vcombine.high %v1296, %v1296
  %v1319 = vcombine.high %v1303, %v1303
  %v1320 = vcombine.high %v1310, %v1310
  %v1321 = vcombine.high %v1317, %v1317
  %v1322 = vcombine.high %v1218, %v1218
  %v1324 = vunpack.c.l.s4 1966171168
  %v1325 = vunpack.c.0.s8 %v1324
  %v1326 = vlaneseq
  %v1327 = vshrl.u32 %v1326, 7
  %v1328 = vsub.s32 %v1325, %v1327
  %v1329 = vrot.slane %v1218, %v1328
  %v1331 = vunpack.c.l.s4 1966171168
  %v1332 = vunpack.c.0.s8 %v1331
  %v1333 = vlaneseq
  %v1334 = vshrl.u32 %v1333, 7
  %v1335 = vsub.s32 %v1332, %v1334
  %v1336 = vrot.slane %v1322, %v1335
  %v1337 = vcombine.high %v1329, %v1329
  %v1338 = vcombine.high %v1336, %v1336
  %v1340 = vunpack.c.l.s4 1966171168
  %v1341 = vunpack.c.0.s8 %v1340
  %v1342 = vlaneseq
  %v1343 = vshrl.u32 %v1342, 7
  %v1344 = vsub.s32 %v1341, %v1343
  %v1345 = vrot.slane %v1329, %v1344
  %v1347 = vunpack.c.l.s4 1966171168
  %v1348 = vunpack.c.0.s8 %v1347
  %v1349 = vlaneseq
  %v1350 = vshrl.u32 %v1349, 7
  %v1351 = vsub.s32 %v1348, %v1350
  %v1352 = vrot.slane %v1336, %v1351
  %v1354 = vunpack.c.l.s4 1966171168
  %v1355 = vunpack.c.0.s8 %v1354
  %v1356 = vlaneseq
  %v1357 = vshrl.u32 %v1356, 7
  %v1358 = vsub.s32 %v1355, %v1357
  %v1359 = vrot.slane %v1337, %v1358
  %v1361 = vunpack.c.l.s4 1966171168
  %v1362 = vunpack.c.0.s8 %v1361
  %v1363 = vlaneseq
  %v1364 = vshrl.u32 %v1363, 7
  %v1365 = vsub.s32 %v1362, %v1364
  %v1366 = vrot.slane %v1338, %v1365
  %v1367 = vcombine.high %v1345, %v1345
  %v1368 = vcombine.high %v1352, %v1352
  %v1369 = vcombine.high %v1359, %v1359
  %v1370 = vcombine.high %v1366, %v1366
  %v1372 = vunpack.c.l.s4 1966171168
  %v1373 = vunpack.c.0.s8 %v1372
  %v1374 = vlaneseq
  %v1375 = vshrl.u32 %v1374, 7
  %v1376 = vsub.s32 %v1373, %v1375
  %v1377 = vrot.slane %v1219, %v1376
  %v1378 = vcombine.high %v1377, %v1377
  %v1380 = vunpack.c.l.s4 1966171168
  %v1381 = vunpack.c.0.s8 %v1380
  %v1382 = vlaneseq
  %v1383 = vshrl.u32 %v1382, 7
  %v1384 = vsub.s32 %v1381, %v1383
  %v1385 = vrot.slane %v1377, %v1384
  %v1387 = vunpack.c.l.s4 1966171168
  %v1388 = vunpack.c.0.s8 %v1387
  %v1389 = vlaneseq
  %v1390 = vshrl.u32 %v1389, 7
  %v1391 = vsub.s32 %v1388, %v1390
  %v1392 = vrot.slane %v1378, %v1391
  %v1393 = vcombine.high %v1385, %v1385
  %v1394 = vcombine.high %v1392, %v1392
  %v1395 = vcombine.low %v1247, %v1261
  %v1396 = vcombine.low %v1269, %v1271
  %v1397 = vcombine.low %v1254, %v1268
  %v1399 = vunpack.c.l.s4 1966171168
  %v1400 = vunpack.c.0.s8 %v1399
  %v1401 = vlaneseq
  %v1402 = vshrl.u32 %v1401, 7
  %v1403 = vsub.s32 %v1400, %v1402
  %v1404 = vrot.slane %v1395, %v1403
  %v1406 = vunpack.c.l.s4 1966171168
  %v1407 = vunpack.c.0.s8 %v1406
  %v1408 = vlaneseq
  %v1409 = vshrl.u32 %v1408, 7
  %v1410 = vsub.s32 %v1407, %v1409
  %v1411 = vrot.slane %v1396, %v1410
  %v1413 = vunpack.c.l.s4 1966171168
  %v1414 = vunpack.c.0.s8 %v1413
  %v1415 = vlaneseq
  %v1416 = vshrl.u32 %v1415, 7
  %v1417 = vsub.s32 %v1414, %v1416
  %v1418 = vrot.slane %v1397, %v1417
  %v1420 = vunpack.c.l.s4 1966171168
  %v1421 = vunpack.c.0.s8 %v1420
  %v1422 = vlaneseq
  %v1423 = vshrl.u32 %v1422, 7
  %v1424 = vsub.s32 %v1421, %v1423
  %v1425 = vrot.slane %v1270, %v1424
  %v1426 = vcombine.low %v1404, %v1411
  %v1427 = vcombine.low %v1418, %v1425
  %v1429 = vunpack.c.l.s4 1966171168
  %v1430 = vunpack.c.0.s8 %v1429
  %v1431 = vlaneseq
  %v1432 = vshrl.u32 %v1431, 7
  %v1433 = vsub.s32 %v1430, %v1432
  %v1434 = vrot.slane %v1426, %v1433
  %v1436 = vunpack.c.l.s4 1966171168
  %v1437 = vunpack.c.0.s8 %v1436
  %v1438 = vlaneseq
  %v1439 = vshrl.u32 %v1438, 7
  %v1440 = vsub.s32 %v1437, %v1439
  %v1441 = vrot.slane %v1427, %v1440
  %v1442 = vcombine.low %v1434, %v1441
  %v1443 = vcombine.low %v1272, %v1296
  %v1444 = vcombine.low %v1310, %v1318
  %v1445 = vcombine.low %v1320, %v1303
  %v1447 = vunpack.c.l.s4 1966171168
  %v1448 = vunpack.c.0.s8 %v1447
  %v1449 = vlaneseq
  %v1450 = vshrl.u32 %v1449, 7
  %v1451 = vsub.s32 %v1448, %v1450
  %v1452 = vrot.slane %v1443, %v1451
  %v1454 = vunpack.c.l.s4 1966171168
  %v1455 = vunpack.c.0.s8 %v1454
  %v1456 = vlaneseq
  %v1457 = vshrl.u32 %v1456, 7
  %v1458 = vsub.s32 %v1455, %v1457
  %v1459 = vrot.slane %v1444, %v1458
  %v1461 = vunpack.c.l.s4 1966171168
  %v1462 = vunpack.c.0.s8 %v1461
  %v1463 = vlaneseq
  %v1464 = vshrl.u32 %v1463, 7
  %v1465 = vsub.s32 %v1462, %v1464
  %v1466 = vrot.slane %v1445, %v1465
  %v1468 = vunpack.c.l.s4 1966171168
  %v1469 = vunpack.c.0.s8 %v1468
  %v1470 = vlaneseq
  %v1471 = vshrl.u32 %v1470, 7
  %v1472 = vsub.s32 %v1469, %v1471
  %v1473 = vrot.slane %v1317, %v1472
  %v1474 = vcombine.low %v1452, %v1459
  %v1475 = vcombine.low %v1466, %v1473
  %v1477 = vunpack.c.l.s4 1966171168
  %v1478 = vunpack.c.0.s8 %v1477
  %v1479 = vlaneseq
  %v1480 = vshrl.u32 %v1479, 7
  %v1481 = vsub.s32 %v1478, %v1480
  %v1482 = vrot.slane %v1474, %v1481
  %v1484 = vunpack.c.l.s4 1966171168
  %v1485 = vunpack.c.0.s8 %v1484
  %v1486 = vlaneseq
  %v1487 = vshrl.u32 %v1486, 7
  %v1488 = vsub.s32 %v1485, %v1487
  %v1489 = vrot.slane %v1475, %v1488
  %v1490 = vcombine.low %v1482, %v1489
  %v1491 = vcombine.low %v1319, %v1321
  %v1492 = vcombine.low %v1345, %v1359
  %v1493 = vcombine.low %v1367, %v1369
  %v1495 = vunpack.c.l.s4 1966171168
  %v1496 = vunpack.c.0.s8 %v1495
  %v1497 = vlaneseq
  %v1498 = vshrl.u32 %v1497, 7
  %v1499 = vsub.s32 %v1496, %v1498
  %v1500 = vrot.slane %v1491, %v1499
  %v1502 = vunpack.c.l.s4 1966171168
  %v1503 = vunpack.c.0.s8 %v1502
  %v1504 = vlaneseq
  %v1505 = vshrl.u32 %v1504, 7
  %v1506 = vsub.s32 %v1503, %v1505
  %v1507 = vrot.slane %v1492, %v1506
  %v1509 = vunpack.c.l.s4 1966171168
  %v1510 = vunpack.c.0.s8 %v1509
  %v1511 = vlaneseq
  %v1512 = vshrl.u32 %v1511, 7
  %v1513 = vsub.s32 %v1510, %v1512
  %v1514 = vrot.slane %v1493, %v1513
  %v1516 = vunpack.c.l.s4 1966171168
  %v1517 = vunpack.c.0.s8 %v1516
  %v1518 = vlaneseq
  %v1519 = vshrl.u32 %v1518, 7
  %v1520 = vsub.s32 %v1517, %v1519
  %v1521 = vrot.slane %v1352, %v1520
  %v1522 = vcombine.low %v1500, %v1507
  %v1523 = vcombine.low %v1514, %v1521
  %v1525 = vunpack.c.l.s4 1966171168
  %v1526 = vunpack.c.0.s8 %v1525
  %v1527 = vlaneseq
  %v1528 = vshrl.u32 %v1527, 7
  %v1529 = vsub.s32 %v1526, %v1528
  %v1530 = vrot.slane %v1522, %v1529
  %v1532 = vunpack.c.l.s4 1966171168
  %v1533 = vunpack.c.0.s8 %v1532
  %v1534 = vlaneseq
  %v1535 = vshrl.u32 %v1534, 7
  %v1536 = vsub.s32 %v1533, %v1535
  %v1537 = vrot.slane %v1523, %v1536
  %v1538 = vcombine.low %v1530, %v1537
  %v1539 = vcombine.low %v1366, %v1368
  %v1540 = vcombine.low %v1370, %v1385
  %v1541 = vcombine.low %v1392, %v1393
  %v1543 = vunpack.c.l.s4 1966171168
  %v1544 = vunpack.c.0.s8 %v1543
  %v1545 = vlaneseq
  %v1546 = vshrl.u32 %v1545, 7
  %v1547 = vsub.s32 %v1544, %v1546
  %v1548 = vrot.slane %v1539, %v1547
  %v1550 = vunpack.c.l.s4 1966171168
  %v1551 = vunpack.c.0.s8 %v1550
  %v1552 = vlaneseq
  %v1553 = vshrl.u32 %v1552, 7
  %v1554 = vsub.s32 %v1551, %v1553
  %v1555 = vrot.slane %v1540, %v1554
  %v1557 = vunpack.c.l.s4 1966171168
  %v1558 = vunpack.c.0.s8 %v1557
  %v1559 = vlaneseq
  %v1560 = vshrl.u32 %v1559, 7
  %v1561 = vsub.s32 %v1558, %v1560
  %v1562 = vrot.slane %v1541, %v1561
  %v1564 = vunpack.c.l.s4 1966171168
  %v1565 = vunpack.c.0.s8 %v1564
  %v1566 = vlaneseq
  %v1567 = vshrl.u32 %v1566, 7
  %v1568 = vsub.s32 %v1565, %v1567
  %v1569 = vrot.slane %v1394, %v1568
  %v1570 = vcombine.low %v1548, %v1555
  %v1571 = vcombine.low %v1562, %v1569
  %v1573 = vunpack.c.l.s4 1966171168
  %v1574 = vunpack.c.0.s8 %v1573
  %v1575 = vlaneseq
  %v1576 = vshrl.u32 %v1575, 7
  %v1577 = vsub.s32 %v1574, %v1576
  %v1578 = vrot.slane %v1570, %v1577
  %v1580 = vunpack.c.l.s4 1966171168
  %v1581 = vunpack.c.0.s8 %v1580
  %v1582 = vlaneseq
  %v1583 = vshrl.u32 %v1582, 7
  %v1584 = vsub.s32 %v1581, %v1583
  %v1585 = vrot.slane %v1571, %v1584
  %v1586 = vcombine.low %v1578, %v1585
  %vm1591 = vcmask 260096
  %v1592 = vsel %vm1591, %v1442, -inf
  %v1593 = vrot.slane %v1592, 4
  %v1594 = vmax.f32 %v1592, %v1593
  %v1595 = vrot.slane %v1594, 2
  %v1596 = vmax.f32 %v1594, %v1595
  %v1597 = vrot.slane %v1596, 1
  %v1598 = vmax.f32 %v1596, %v1597
  %v1599 = vsel %vm1591, %v1490, -inf
  %v1600 = vrot.slane %v1599, 4
  %v1601 = vmax.f32 %v1599, %v1600
  %v1602 = vrot.slane %v1601, 2
  %v1603 = vmax.f32 %v1601, %v1602
  %v1604 = vrot.slane %v1603, 1
  %v1605 = vmax.f32 %v1603, %v1604
  %v1606 = vsel %vm1591, %v1538, -inf
  %v1607 = vrot.slane %v1606, 4
  %v1608 = vmax.f32 %v1606, %v1607
  %v1609 = vrot.slane %v1608, 2
  %v1610 = vmax.f32 %v1608, %v1609
  %v1611 = vrot.slane %v1610, 1
  %v1612 = vmax.f32 %v1610, %v1611
  %v1613 = vsel %vm1591, %v1586, -inf
  %v1614 = vrot.slane %v1613, 4
  %v1615 = vmax.f32 %v1613, %v1614
  %v1616 = vrot.slane %v1615, 2
  %v1617 = vmax.f32 %v1615, %v1616
  %v1618 = vrot.slane %v1617, 1
  %v1619 = vmax.f32 %v1617, %v1618
  %v1620 = vld [vmem:[%s6] sm:$0xf]
  %v1621 = vld [vmem:[%s6 + $0x4] sm:$0xf]
  %v1622 = vld [vmem:[%s6 + $0x8] sm:$0xf]
  %v1623 = vld [vmem:[%s6 + $0xc] sm:$0xf]
  %v1624 = vld [vmem:[%s6 + $0x10] sm:$0xf]
  %v1625 = vld [vmem:[%s6 + $0x14] sm:$0xf]
  %v1626 = vld [vmem:[%s6 + $0x18] sm:$0xf]
  %v1627 = vld [vmem:[%s6 + $0x1c] sm:$0xf]
  %v1628 = vld [vmem:[%s6 + $0x20] sm:$0xf]
  %v1629 = vld [vmem:[%s6 + $0x24] sm:$0xf]
  %v1630 = vld [vmem:[%s6 + $0x28] sm:$0xf]
  %v1631 = vld [vmem:[%s6 + $0x2c] sm:$0xf]
  %v1632 = vld [vmem:[%s6 + $0x30] sm:$0xf]
  %v1633 = vld [vmem:[%s6 + $0x34] sm:$0xf]
  %v1634 = vld [vmem:[%s6 + $0x38] sm:$0xf]
  %v1635 = vld [vmem:[%s6 + $0x3c] sm:$0xf]
  %v1636 = vld [vmem:[%s6 + $0x40] sm:$0xf]
  %v1637 = vld [vmem:[%s6 + $0x44] sm:$0xf]
  %v1638 = vld [vmem:[%s6 + $0x48] sm:$0xf]
  %v1639 = vld [vmem:[%s6 + $0x4c] sm:$0xf]
  %v1640 = vld [vmem:[%s7] sm:$0x1]
  %v1641 = vld [vmem:[%s8] sm:$0xf]
  %v1642 = vld [vmem:[%s8 + $0x4] sm:$0xf]
  %v1643 = vld [vmem:[%s8 + $0x8] sm:$0xf]
  %v1644 = vld [vmem:[%s8 + $0xc] sm:$0xf]
  %v1645 = vld [vmem:[%s8 + $0x10] sm:$0xf]
  %v1646 = vld [vmem:[%s8 + $0x14] sm:$0xf]
  %v1647 = vld [vmem:[%s8 + $0x18] sm:$0xf]
  %v1648 = vld [vmem:[%s8 + $0x1c] sm:$0xf]
  %v1649 = vld [vmem:[%s8 + $0x20] sm:$0xf]
  %v1650 = vld [vmem:[%s8 + $0x24] sm:$0xf]
  %v1651 = vld [vmem:[%s8 + $0x28] sm:$0xf]
  %v1652 = vld [vmem:[%s8 + $0x2c] sm:$0xf]
  %v1653 = vld [vmem:[%s8 + $0x30] sm:$0xf]
  %v1654 = vld [vmem:[%s8 + $0x34] sm:$0xf]
  %v1655 = vld [vmem:[%s8 + $0x38] sm:$0xf]
  %v1656 = vld [vmem:[%s8 + $0x3c] sm:$0xf]
  %v1657 = vld [vmem:[%s8 + $0x40] sm:$0xf]
  %v1658 = vld [vmem:[%s8 + $0x44] sm:$0xf]
  %v1659 = vld [vmem:[%s8 + $0x48] sm:$0xf]
  %v1660 = vld [vmem:[%s8 + $0x4c] sm:$0xf]
  %v1661 = vld [vmem:[%s9] sm:$0x1]
  %vm1662 = vcmask 1044480
  %v1663 = vrot.slane %v402, 3
  %v1664 = vrot.slane %v406, 3
  %v1665 = vsel %vm1662, %v1663, %v1664
  %v1666 = vrot.slane %v403, 3
  %v1667 = vrot.slane %v407, 3
  %v1668 = vsel %vm1662, %v1666, %v1667
  %v1669 = vrot.slane %v404, 3
  %v1670 = vrot.slane %v408, 3
  %v1671 = vsel %vm1662, %v1669, %v1670
  %v1672 = vrot.slane %v405, 3
  %v1673 = vrot.slane %v409, 3
  %v1674 = vsel %vm1662, %v1672, %v1673
  %1675 = vrot.lane.b32.xlu0 %v1665, 96
  %v1676 = vpop.permute.xlu0 %1675
  %1677 = vrot.lane.b32.xlu0 %v1668, 96
  %v1678 = vpop.permute.xlu0 %1677
  %1679 = vrot.lane.b32.xlu0 %v1671, 96
  %v1680 = vpop.permute.xlu0 %1679
  %1681 = vrot.lane.b32.xlu0 %v1674, 96
  %v1682 = vpop.permute.xlu0 %1681
  %vm1687 = vcmask 1043456
  %v1688 = vrot.slane %v402, 4
  %v1689 = vrot.slane %v406, 4
  %v1690 = vsel %vm1687, %v1688, %v1689
  %v1691 = vrot.slane %v403, 4
  %v1692 = vrot.slane %v407, 4
  %v1693 = vsel %vm1687, %v1691, %v1692
  %v1694 = vrot.slane %v404, 4
  %v1695 = vrot.slane %v408, 4
  %v1696 = vsel %vm1687, %v1694, %v1695
  %v1697 = vrot.slane %v405, 4
  %v1698 = vrot.slane %v409, 4
  %v1699 = vsel %vm1687, %v1697, %v1698
  %v1704 = vsel %vm603, %v527, %v1676
  %v1705 = vsel %vm603, %v529, %v1678
  %v1706 = vsel %vm603, %v531, %v1680
  %v1707 = vsel %vm603, %v533, %v1682
  %v1708 = vpack.c.bf16 %v1705, %v1704
  %v1709 = vpack.c.bf16 %v1693, %v1690
  %v1710 = vpack.c.bf16 %v1707, %v1706
  %v1711 = vpack.c.bf16 %v1699, %v1696
  %v1713 = vlaneseq
  %v1714 = vshrl.u32 %v1713, 7
  %v1715 = vsub.s32 0, %v1714
  %v1716 = vrot.slane %v1640, %v1715
  %v1738 = vunpack.c.l.b16 %v1620
  %v1739 = vunpack.c.l.b16 %v1621
  %v1740 = vunpack.c.l.b16 %v1622
  %v1741 = vunpack.c.l.b16 %v1623
  %v1742 = vunpack.c.l.b16 %v1624
  %v1743 = vunpack.c.l.b16 %v1625
  %v1744 = vunpack.c.l.b16 %v1626
  %v1745 = vunpack.c.l.b16 %v1627
  %v1746 = vunpack.c.l.b16 %v1628
  %v1747 = vunpack.c.l.b16 %v1629
  %v1748 = vunpack.c.l.b16 %v1630
  %v1749 = vunpack.c.l.b16 %v1631
  %v1750 = vunpack.c.l.b16 %v1632
  %v1751 = vunpack.c.l.b16 %v1633
  %v1752 = vunpack.c.l.b16 %v1634
  %v1753 = vunpack.c.l.b16 %v1635
  %v1754 = vunpack.c.l.b16 %v1636
  %v1755 = vunpack.c.l.b16 %v1637
  %v1756 = vunpack.c.l.b16 %v1638
  %v1757 = vunpack.c.l.b16 %v1639
  %v1758 = vpack.c.b16 %v1739, %v1738
  %v1759 = vpack.c.b16 %v1741, %v1740
  %v1760 = vpack.c.b16 %v1743, %v1742
  %v1761 = vpack.c.b16 %v1745, %v1744
  %v1762 = vpack.c.b16 %v1747, %v1746
  %v1763 = vpack.c.b16 %v1749, %v1748
  %v1764 = vpack.c.b16 %v1751, %v1750
  %v1765 = vpack.c.b16 %v1753, %v1752
  %v1766 = vpack.c.b16 %v1755, %v1754
  %v1767 = vpack.c.b16 %v1757, %v1756
  %v1779 = vsel %vm52, %v1709, 0
  %v1782 = vsel %vm52, %v1711, 0
  %1784 = vmatprep.subr.bf16.mxu0 0
  %1785 = vmatpush1.bf16.msra.mxu0 %v1758
  %1786 = vmatprep.subr.bf16.mxu0 0
  %1787 = vmatpush1.bf16.msra.mxu0 %v1759
  %1788 = vmatprep.subr.bf16.mxu0 0
  %1789 = vmatpush1.bf16.msra.mxu0 %v1760
  %1790 = vmatprep.subr.bf16.mxu0 0
  %1791 = vmatpush1.bf16.msra.mxu0 %v1761
  %1792 = vmatprep.subr.bf16.mxu0 0
  %1793 = vmatpush1.bf16.msra.mxu0 %v1762
  %1794 = vmatprep.subr.bf16.mxu0 0
  %1795 = vmatpush1.bf16.msra.mxu0 %v1763
  %1796 = vmatprep.subr.bf16.mxu0 0
  %1797 = vmatpush1.bf16.msra.mxu0 %v1764
  %1798 = vmatprep.subr.bf16.mxu0 0
  %1799 = vmatpush1.bf16.msra.mxu0 %v1765
  %1800 = vmatprep.subr.bf16.mxu0 0
  %1801 = vmatpush1.bf16.msra.mxu0 %v1766
  %1802 = vmatprep.subr.bf16.mxu0 0
  %1803 = vmatpush1.bf16.msra.mxu0 %v1767
  %1804 = vmatprep.subr.bf16.mxu0 0
  %1805 = vmatpush1.bf16.msra.mxu0 0
  %1806 = vmatprep.subr.bf16.mxu0 0
  %1807 = vmatpush1.bf16.msra.mxu0 0
  %1808 = vmatprep.subr.bf16.mxu0 0
  %1809 = vmatpush1.bf16.msra.mxu0 0
  %1810 = vmatprep.subr.bf16.mxu0 0
  %1811 = vmatpush1.bf16.msra.mxu0 0
  %1812 = vmatprep.subr.bf16.mxu0 0
  %1813 = vmatpush1.bf16.msra.mxu0 0
  %1814 = vmatprep.subr.bf16.mxu0 0
  %1815 = vmatpush1.bf16.msra.mxu0 0
  %1816 = vmatprep.mubr.bf16.mxu0 %v1779
  %1817 = vmatmul.mubr.bf16.gmra.mrb[0].mxu0 %v1708
  %v1818 = vpop.f32.mrb[0].mxu0
  %v1819 = vadd.f32 %v1716, %v1818
  %v1820 = vpop.f32.mrb[0].mxu0
  %v1821 = vpop.f32.mrb[0].mxu0
  %v1822 = vadd.f32 %v1716, %v1821
  %v1823 = vpop.f32.mrb[0].mxu0
  %1824 = vmatprep.mubr.bf16.mxu0 %v1782
  %1825 = vmatmul.mubr.bf16.gmra.mrb[0].mxu0 %v1710
  %v1826 = vpop.f32.mrb[0].mxu0
  %v1827 = vadd.f32 %v1716, %v1826
  %v1828 = vpop.f32.mrb[0].mxu0
  %v1829 = vpop.f32.mrb[0].mxu0
  %v1830 = vadd.f32 %v1716, %v1829
  %v1831 = vpop.f32.mrb[0].mxu0
  %1832 = vdwg.mxu0
  %v1833 = vmax.f32 %v1819, 0.0
  %v1834 = vmax.f32 %v1822, 0.0
  %v1835 = vmax.f32 %v1827, 0.0
  %v1836 = vmax.f32 %v1830, 0.0
  %v1841 = vrot.slane %v1833, 1
  %v1842 = vrot.slane %v1834, 1
  %v1843 = vrot.slane %v1835, 1
  %v1844 = vrot.slane %v1836, 1
  %v1849 = vmax.f32 %v1833, %v1841
  %v1850 = vmax.f32 %v1834, %v1842
  %v1851 = vmax.f32 %v1835, %v1843
  %v1852 = vmax.f32 %v1836, %v1844
  %v1857 = vrot.slane %v1849, 6
  %v1858 = vrot.slane %v1850, 6
  %v1859 = vrot.slane %v1851, 6
  %v1860 = vrot.slane %v1852, 6
  %v1865 = vsel %vm401, 0.0, %v1857
  %v1866 = vsel %vm401, 0.0, %v1858
  %v1867 = vsel %vm401, 0.0, %v1859
  %v1868 = vsel %vm401, 0.0, %v1860
  %v1869 = vsel %vm691, %v1857, 0.0
  %v1870 = vsel %vm691, %v1858, 0.0
  %v1871 = vsel %vm691, %v1859, 0.0
  %v1872 = vsel %vm691, %v1860, 0.0
  %v1877 = vrot.slane %v1865, 1
  %v1878 = vrot.slane %v1866, 1
  %v1879 = vrot.slane %v1867, 1
  %v1880 = vrot.slane %v1868, 1
  %1881 = vrot.lane.b32.xlu0 %v1877, 32
  %v1882 = vpop.permute.xlu0 %1881
  %1883 = vrot.lane.b32.xlu0 %v1878, 32
  %v1884 = vpop.permute.xlu0 %1883
  %1885 = vrot.lane.b32.xlu0 %v1879, 32
  %v1886 = vpop.permute.xlu0 %1885
  %1887 = vrot.lane.b32.xlu0 %v1880, 32
  %v1888 = vpop.permute.xlu0 %1887
  %v1897 = vrot.slane %v1865, 2
  %v1898 = vrot.slane %v1869, 2
  %v1899 = vsel %vm481, %v1897, %v1898
  %v1900 = vrot.slane %v1866, 2
  %v1901 = vrot.slane %v1870, 2
  %v1902 = vsel %vm481, %v1900, %v1901
  %v1903 = vrot.slane %v1867, 2
  %v1904 = vrot.slane %v1871, 2
  %v1905 = vsel %vm481, %v1903, %v1904
  %v1906 = vrot.slane %v1868, 2
  %v1907 = vrot.slane %v1872, 2
  %v1908 = vsel %vm481, %v1906, %v1907
  %1909 = vrot.lane.b32.xlu0 %v1899, 64
  %v1910 = vpop.permute.xlu0 %1909
  %1911 = vrot.lane.b32.xlu0 %v1902, 64
  %v1912 = vpop.permute.xlu0 %1911
  %1913 = vrot.lane.b32.xlu0 %v1905, 64
  %v1914 = vpop.permute.xlu0 %1913
  %1915 = vrot.lane.b32.xlu0 %v1908, 64
  %v1916 = vpop.permute.xlu0 %1915
  %v1921 = vrot.slane %v1865, 3
  %v1922 = vrot.slane %v1869, 3
  %v1923 = vsel %vm1662, %v1921, %v1922
  %v1924 = vrot.slane %v1866, 3
  %v1925 = vrot.slane %v1870, 3
  %v1926 = vsel %vm1662, %v1924, %v1925
  %v1927 = vrot.slane %v1867, 3
  %v1928 = vrot.slane %v1871, 3
  %v1929 = vsel %vm1662, %v1927, %v1928
  %v1930 = vrot.slane %v1868, 3
  %v1931 = vrot.slane %v1872, 3
  %v1932 = vsel %vm1662, %v1930, %v1931
  %1933 = vrot.lane.b32.xlu0 %v1923, 96
  %v1934 = vpop.permute.xlu0 %1933
  %1935 = vrot.lane.b32.xlu0 %v1926, 96
  %v1936 = vpop.permute.xlu0 %1935
  %1937 = vrot.lane.b32.xlu0 %v1929, 96
  %v1938 = vpop.permute.xlu0 %1937
  %1939 = vrot.lane.b32.xlu0 %v1932, 96
  %v1940 = vpop.permute.xlu0 %1939
  %v1945 = vrot.slane %v1865, 4
  %v1946 = vrot.slane %v1869, 4
  %v1947 = vsel %vm1687, %v1945, %v1946
  %v1948 = vrot.slane %v1866, 4
  %v1949 = vrot.slane %v1870, 4
  %v1950 = vsel %vm1687, %v1948, %v1949
  %v1951 = vrot.slane %v1867, 4
  %v1952 = vrot.slane %v1871, 4
  %v1953 = vsel %vm1687, %v1951, %v1952
  %v1954 = vrot.slane %v1868, 4
  %v1955 = vrot.slane %v1872, 4
  %v1956 = vsel %vm1687, %v1954, %v1955
  %v1957 = vsel %vm52, %v1865, %v1882
  %v1958 = vsel %vm52, %v1866, %v1884
  %v1959 = vsel %vm52, %v1867, %v1886
  %v1960 = vsel %vm52, %v1868, %v1888
  %v1961 = vsel %vm526, %v1957, %v1910
  %v1962 = vsel %vm526, %v1958, %v1912
  %v1963 = vsel %vm526, %v1959, %v1914
  %v1964 = vsel %vm526, %v1960, %v1916
  %v1965 = vsel %vm603, %v1961, %v1934
  %v1966 = vsel %vm603, %v1962, %v1936
  %v1967 = vsel %vm603, %v1963, %v1938
  %v1968 = vsel %vm603, %v1964, %v1940
  %v1973 = vcombine.low %v1965, %v1947
  %v1974 = vcombine.high %v1965, %v1947
  %v1976 = vunpack.c.l.s4 1966171168
  %v1977 = vunpack.c.0.s8 %v1976
  %v1978 = vlaneseq
  %v1979 = vshrl.u32 %v1978, 7
  %v1980 = vsub.s32 %v1977, %v1979
  %v1981 = vrot.slane %v1973, %v1980
  %v1983 = vunpack.c.l.s4 1966171168
  %v1984 = vunpack.c.0.s8 %v1983
  %v1985 = vlaneseq
  %v1986 = vshrl.u32 %v1985, 7
  %v1987 = vsub.s32 %v1984, %v1986
  %v1988 = vrot.slane %v1974, %v1987
  %v1989 = vcombine.high %v1981, %v1981
  %v1990 = vcombine.high %v1988, %v1988
  %v1992 = vunpack.c.l.s4 1966171168
  %v1993 = vunpack.c.0.s8 %v1992
  %v1994 = vlaneseq
  %v1995 = vshrl.u32 %v1994, 7
  %v1996 = vsub.s32 %v1993, %v1995
  %v1997 = vrot.slane %v1981, %v1996
  %v1999 = vunpack.c.l.s4 1966171168
  %v2000 = vunpack.c.0.s8 %v1999
  %v2001 = vlaneseq
  %v2002 = vshrl.u32 %v2001, 7
  %v2003 = vsub.s32 %v2000, %v2002
  %v2004 = vrot.slane %v1988, %v2003
  %v2006 = vunpack.c.l.s4 1966171168
  %v2007 = vunpack.c.0.s8 %v2006
  %v2008 = vlaneseq
  %v2009 = vshrl.u32 %v2008, 7
  %v2010 = vsub.s32 %v2007, %v2009
  %v2011 = vrot.slane %v1989, %v2010
  %v2013 = vunpack.c.l.s4 1966171168
  %v2014 = vunpack.c.0.s8 %v2013
  %v2015 = vlaneseq
  %v2016 = vshrl.u32 %v2015, 7
  %v2017 = vsub.s32 %v2014, %v2016
  %v2018 = vrot.slane %v1990, %v2017
  %v2019 = vcombine.high %v1997, %v1997
  %v2020 = vcombine.high %v2004, %v2004
  %v2021 = vcombine.high %v2011, %v2011
  %v2022 = vcombine.low %v1966, %v1950
  %v2023 = vcombine.high %v1966, %v1950
  %v2025 = vunpack.c.l.s4 1966171168
  %v2026 = vunpack.c.0.s8 %v2025
  %v2027 = vlaneseq
  %v2028 = vshrl.u32 %v2027, 7
  %v2029 = vsub.s32 %v2026, %v2028
  %v2030 = vrot.slane %v2022, %v2029
  %v2032 = vunpack.c.l.s4 1966171168
  %v2033 = vunpack.c.0.s8 %v2032
  %v2034 = vlaneseq
  %v2035 = vshrl.u32 %v2034, 7
  %v2036 = vsub.s32 %v2033, %v2035
  %v2037 = vrot.slane %v2023, %v2036
  %v2038 = vcombine.high %v2030, %v2030
  %v2039 = vcombine.high %v2037, %v2037
  %v2041 = vunpack.c.l.s4 1966171168
  %v2042 = vunpack.c.0.s8 %v2041
  %v2043 = vlaneseq
  %v2044 = vshrl.u32 %v2043, 7
  %v2045 = vsub.s32 %v2042, %v2044
  %v2046 = vrot.slane %v2030, %v2045
  %v2048 = vunpack.c.l.s4 1966171168
  %v2049 = vunpack.c.0.s8 %v2048
  %v2050 = vlaneseq
  %v2051 = vshrl.u32 %v2050, 7
  %v2052 = vsub.s32 %v2049, %v2051
  %v2053 = vrot.slane %v2037, %v2052
  %v2055 = vunpack.c.l.s4 1966171168
  %v2056 = vunpack.c.0.s8 %v2055
  %v2057 = vlaneseq
  %v2058 = vshrl.u32 %v2057, 7
  %v2059 = vsub.s32 %v2056, %v2058
  %v2060 = vrot.slane %v2038, %v2059
  %v2062 = vunpack.c.l.s4 1966171168
  %v2063 = vunpack.c.0.s8 %v2062
  %v2064 = vlaneseq
  %v2065 = vshrl.u32 %v2064, 7
  %v2066 = vsub.s32 %v2063, %v2065
  %v2067 = vrot.slane %v2039, %v2066
  %v2068 = vcombine.high %v2046, %v2046
  %v2069 = vcombine.high %v2053, %v2053
  %v2070 = vcombine.high %v2060, %v2060
  %v2071 = vcombine.low %v1967, %v1953
  %v2072 = vcombine.high %v1967, %v1953
  %v2074 = vunpack.c.l.s4 1966171168
  %v2075 = vunpack.c.0.s8 %v2074
  %v2076 = vlaneseq
  %v2077 = vshrl.u32 %v2076, 7
  %v2078 = vsub.s32 %v2075, %v2077
  %v2079 = vrot.slane %v2071, %v2078
  %v2081 = vunpack.c.l.s4 1966171168
  %v2082 = vunpack.c.0.s8 %v2081
  %v2083 = vlaneseq
  %v2084 = vshrl.u32 %v2083, 7
  %v2085 = vsub.s32 %v2082, %v2084
  %v2086 = vrot.slane %v2072, %v2085
  %v2087 = vcombine.high %v2079, %v2079
  %v2088 = vcombine.high %v2086, %v2086
  %v2090 = vunpack.c.l.s4 1966171168
  %v2091 = vunpack.c.0.s8 %v2090
  %v2092 = vlaneseq
  %v2093 = vshrl.u32 %v2092, 7
  %v2094 = vsub.s32 %v2091, %v2093
  %v2095 = vrot.slane %v2079, %v2094
  %v2097 = vunpack.c.l.s4 1966171168
  %v2098 = vunpack.c.0.s8 %v2097
  %v2099 = vlaneseq
  %v2100 = vshrl.u32 %v2099, 7
  %v2101 = vsub.s32 %v2098, %v2100
  %v2102 = vrot.slane %v2086, %v2101
  %v2104 = vunpack.c.l.s4 1966171168
  %v2105 = vunpack.c.0.s8 %v2104
  %v2106 = vlaneseq
  %v2107 = vshrl.u32 %v2106, 7
  %v2108 = vsub.s32 %v2105, %v2107
  %v2109 = vrot.slane %v2087, %v2108
  %v2111 = vunpack.c.l.s4 1966171168
  %v2112 = vunpack.c.0.s8 %v2111
  %v2113 = vlaneseq
  %v2114 = vshrl.u32 %v2113, 7
  %v2115 = vsub.s32 %v2112, %v2114
  %v2116 = vrot.slane %v2088, %v2115
  %v2117 = vcombine.high %v2095, %v2095
  %v2118 = vcombine.high %v2102, %v2102
  %v2119 = vcombine.high %v2109, %v2109
  %v2120 = vcombine.low %v1968, %v1956
  %v2121 = vcombine.high %v1968, %v1956
  %v2123 = vunpack.c.l.s4 1966171168
  %v2124 = vunpack.c.0.s8 %v2123
  %v2125 = vlaneseq
  %v2126 = vshrl.u32 %v2125, 7
  %v2127 = vsub.s32 %v2124, %v2126
  %v2128 = vrot.slane %v2120, %v2127
  %v2130 = vunpack.c.l.s4 1966171168
  %v2131 = vunpack.c.0.s8 %v2130
  %v2132 = vlaneseq
  %v2133 = vshrl.u32 %v2132, 7
  %v2134 = vsub.s32 %v2131, %v2133
  %v2135 = vrot.slane %v2121, %v2134
  %v2136 = vcombine.high %v2128, %v2128
  %v2137 = vcombine.high %v2135, %v2135
  %v2139 = vunpack.c.l.s4 1966171168
  %v2140 = vunpack.c.0.s8 %v2139
  %v2141 = vlaneseq
  %v2142 = vshrl.u32 %v2141, 7
  %v2143 = vsub.s32 %v2140, %v2142
  %v2144 = vrot.slane %v2128, %v2143
  %v2146 = vunpack.c.l.s4 1966171168
  %v2147 = vunpack.c.0.s8 %v2146
  %v2148 = vlaneseq
  %v2149 = vshrl.u32 %v2148, 7
  %v2150 = vsub.s32 %v2147, %v2149
  %v2151 = vrot.slane %v2135, %v2150
  %v2153 = vunpack.c.l.s4 1966171168
  %v2154 = vunpack.c.0.s8 %v2153
  %v2155 = vlaneseq
  %v2156 = vshrl.u32 %v2155, 7
  %v2157 = vsub.s32 %v2154, %v2156
  %v2158 = vrot.slane %v2136, %v2157
  %v2160 = vunpack.c.l.s4 1966171168
  %v2161 = vunpack.c.0.s8 %v2160
  %v2162 = vlaneseq
  %v2163 = vshrl.u32 %v2162, 7
  %v2164 = vsub.s32 %v2161, %v2163
  %v2165 = vrot.slane %v2137, %v2164
  %v2166 = vcombine.high %v2144, %v2144
  %v2167 = vcombine.high %v2151, %v2151
  %v2168 = vcombine.high %v2158, %v2158
  %v2169 = vcombine.low %v1997, %v2011
  %v2170 = vcombine.low %v2019, %v2021
  %v2171 = vcombine.low %v2004, %v2018
  %v2172 = vcombine.low %v2020, %v2046
  %v2174 = vunpack.c.l.s4 1966171168
  %v2175 = vunpack.c.0.s8 %v2174
  %v2176 = vlaneseq
  %v2177 = vshrl.u32 %v2176, 7
  %v2178 = vsub.s32 %v2175, %v2177
  %v2179 = vrot.slane %v2169, %v2178
  %v2181 = vunpack.c.l.s4 1966171168
  %v2182 = vunpack.c.0.s8 %v2181
  %v2183 = vlaneseq
  %v2184 = vshrl.u32 %v2183, 7
  %v2185 = vsub.s32 %v2182, %v2184
  %v2186 = vrot.slane %v2170, %v2185
  %v2188 = vunpack.c.l.s4 1966171168
  %v2189 = vunpack.c.0.s8 %v2188
  %v2190 = vlaneseq
  %v2191 = vshrl.u32 %v2190, 7
  %v2192 = vsub.s32 %v2189, %v2191
  %v2193 = vrot.slane %v2171, %v2192
  %v2195 = vunpack.c.l.s4 1966171168
  %v2196 = vunpack.c.0.s8 %v2195
  %v2197 = vlaneseq
  %v2198 = vshrl.u32 %v2197, 7
  %v2199 = vsub.s32 %v2196, %v2198
  %v2200 = vrot.slane %v2172, %v2199
  %v2201 = vcombine.low %v2179, %v2186
  %v2202 = vcombine.high %v2179, %v2186
  %v2203 = vcombine.low %v2193, %v2200
  %v2204 = vcombine.high %v2193, %v2200
  %v2206 = vunpack.c.l.s4 1966171168
  %v2207 = vunpack.c.0.s8 %v2206
  %v2208 = vlaneseq
  %v2209 = vshrl.u32 %v2208, 7
  %v2210 = vsub.s32 %v2207, %v2209
  %v2211 = vrot.slane %v2201, %v2210
  %v2213 = vunpack.c.l.s4 1966171168
  %v2214 = vunpack.c.0.s8 %v2213
  %v2215 = vlaneseq
  %v2216 = vshrl.u32 %v2215, 7
  %v2217 = vsub.s32 %v2214, %v2216
  %v2218 = vrot.slane %v2202, %v2217
  %v2220 = vunpack.c.l.s4 1966171168
  %v2221 = vunpack.c.0.s8 %v2220
  %v2222 = vlaneseq
  %v2223 = vshrl.u32 %v2222, 7
  %v2224 = vsub.s32 %v2221, %v2223
  %v2225 = vrot.slane %v2203, %v2224
  %v2227 = vunpack.c.l.s4 1966171168
  %v2228 = vunpack.c.0.s8 %v2227
  %v2229 = vlaneseq
  %v2230 = vshrl.u32 %v2229, 7
  %v2231 = vsub.s32 %v2228, %v2230
  %v2232 = vrot.slane %v2204, %v2231
  %v2233 = vcombine.low %v2211, %v2225
  %v2234 = vcombine.low %v2218, %v2232
  %v2235 = vcombine.low %v2060, %v2068
  %v2236 = vcombine.low %v2070, %v2053
  %v2237 = vcombine.low %v2067, %v2069
  %v2238 = vcombine.low %v2095, %v2109
  %v2240 = vunpack.c.l.s4 1966171168
  %v2241 = vunpack.c.0.s8 %v2240
  %v2242 = vlaneseq
  %v2243 = vshrl.u32 %v2242, 7
  %v2244 = vsub.s32 %v2241, %v2243
  %v2245 = vrot.slane %v2235, %v2244
  %v2247 = vunpack.c.l.s4 1966171168
  %v2248 = vunpack.c.0.s8 %v2247
  %v2249 = vlaneseq
  %v2250 = vshrl.u32 %v2249, 7
  %v2251 = vsub.s32 %v2248, %v2250
  %v2252 = vrot.slane %v2236, %v2251
  %v2254 = vunpack.c.l.s4 1966171168
  %v2255 = vunpack.c.0.s8 %v2254
  %v2256 = vlaneseq
  %v2257 = vshrl.u32 %v2256, 7
  %v2258 = vsub.s32 %v2255, %v2257
  %v2259 = vrot.slane %v2237, %v2258
  %v2261 = vunpack.c.l.s4 1966171168
  %v2262 = vunpack.c.0.s8 %v2261
  %v2263 = vlaneseq
  %v2264 = vshrl.u32 %v2263, 7
  %v2265 = vsub.s32 %v2262, %v2264
  %v2266 = vrot.slane %v2238, %v2265
  %v2267 = vcombine.low %v2245, %v2252
  %v2268 = vcombine.high %v2245, %v2252
  %v2269 = vcombine.low %v2259, %v2266
  %v2270 = vcombine.high %v2259, %v2266
  %v2272 = vunpack.c.l.s4 1966171168
  %v2273 = vunpack.c.0.s8 %v2272
  %v2274 = vlaneseq
  %v2275 = vshrl.u32 %v2274, 7
  %v2276 = vsub.s32 %v2273, %v2275
  %v2277 = vrot.slane %v2267, %v2276
  %v2279 = vunpack.c.l.s4 1966171168
  %v2280 = vunpack.c.0.s8 %v2279
  %v2281 = vlaneseq
  %v2282 = vshrl.u32 %v2281, 7
  %v2283 = vsub.s32 %v2280, %v2282
  %v2284 = vrot.slane %v2268, %v2283
  %v2286 = vunpack.c.l.s4 1966171168
  %v2287 = vunpack.c.0.s8 %v2286
  %v2288 = vlaneseq
  %v2289 = vshrl.u32 %v2288, 7
  %v2290 = vsub.s32 %v2287, %v2289
  %v2291 = vrot.slane %v2269, %v2290
  %v2293 = vunpack.c.l.s4 1966171168
  %v2294 = vunpack.c.0.s8 %v2293
  %v2295 = vlaneseq
  %v2296 = vshrl.u32 %v2295, 7
  %v2297 = vsub.s32 %v2294, %v2296
  %v2298 = vrot.slane %v2270, %v2297
  %v2299 = vcombine.low %v2277, %v2291
  %v2300 = vcombine.low %v2284, %v2298
  %v2301 = vcombine.low %v2117, %v2119
  %v2302 = vcombine.low %v2102, %v2116
  %v2303 = vcombine.low %v2118, %v2144
  %v2304 = vcombine.low %v2158, %v2166
  %v2306 = vunpack.c.l.s4 1966171168
  %v2307 = vunpack.c.0.s8 %v2306
  %v2308 = vlaneseq
  %v2309 = vshrl.u32 %v2308, 7
  %v2310 = vsub.s32 %v2307, %v2309
  %v2311 = vrot.slane %v2301, %v2310
  %v2313 = vunpack.c.l.s4 1966171168
  %v2314 = vunpack.c.0.s8 %v2313
  %v2315 = vlaneseq
  %v2316 = vshrl.u32 %v2315, 7
  %v2317 = vsub.s32 %v2314, %v2316
  %v2318 = vrot.slane %v2302, %v2317
  %v2320 = vunpack.c.l.s4 1966171168
  %v2321 = vunpack.c.0.s8 %v2320
  %v2322 = vlaneseq
  %v2323 = vshrl.u32 %v2322, 7
  %v2324 = vsub.s32 %v2321, %v2323
  %v2325 = vrot.slane %v2303, %v2324
  %v2327 = vunpack.c.l.s4 1966171168
  %v2328 = vunpack.c.0.s8 %v2327
  %v2329 = vlaneseq
  %v2330 = vshrl.u32 %v2329, 7
  %v2331 = vsub.s32 %v2328, %v2330
  %v2332 = vrot.slane %v2304, %v2331
  %v2333 = vcombine.low %v2311, %v2318
  %v2334 = vcombine.high %v2311, %v2318
  %v2335 = vcombine.low %v2325, %v2332
  %v2336 = vcombine.high %v2325, %v2332
  %v2338 = vunpack.c.l.s4 1966171168
  %v2339 = vunpack.c.0.s8 %v2338
  %v2340 = vlaneseq
  %v2341 = vshrl.u32 %v2340, 7
  %v2342 = vsub.s32 %v2339, %v2341
  %v2343 = vrot.slane %v2333, %v2342
  %v2345 = vunpack.c.l.s4 1966171168
  %v2346 = vunpack.c.0.s8 %v2345
  %v2347 = vlaneseq
  %v2348 = vshrl.u32 %v2347, 7
  %v2349 = vsub.s32 %v2346, %v2348
  %v2350 = vrot.slane %v2334, %v2349
  %v2352 = vunpack.c.l.s4 1966171168
  %v2353 = vunpack.c.0.s8 %v2352
  %v2354 = vlaneseq
  %v2355 = vshrl.u32 %v2354, 7
  %v2356 = vsub.s32 %v2353, %v2355
  %v2357 = vrot.slane %v2335, %v2356
  %v2359 = vunpack.c.l.s4 1966171168
  %v2360 = vunpack.c.0.s8 %v2359
  %v2361 = vlaneseq
  %v2362 = vshrl.u32 %v2361, 7
  %v2363 = vsub.s32 %v2360, %v2362
  %v2364 = vrot.slane %v2336, %v2363
  %v2365 = vcombine.low %v2343, %v2357
  %v2366 = vcombine.low %v2350, %v2364
  %v2367 = vcombine.low %v2168, %v2151
  %v2368 = vcombine.low %v2165, %v2167
  %v2370 = vunpack.c.l.s4 1966171168
  %v2371 = vunpack.c.0.s8 %v2370
  %v2372 = vlaneseq
  %v2373 = vshrl.u32 %v2372, 7
  %v2374 = vsub.s32 %v2371, %v2373
  %v2375 = vrot.slane %v2367, %v2374
  %v2377 = vunpack.c.l.s4 1966171168
  %v2378 = vunpack.c.0.s8 %v2377
  %v2379 = vlaneseq
  %v2380 = vshrl.u32 %v2379, 7
  %v2381 = vsub.s32 %v2378, %v2380
  %v2382 = vrot.slane %v2368, %v2381
  %v2383 = vcombine.low %v2375, %v2382
  %v2384 = vcombine.high %v2375, %v2382
  %v2386 = vunpack.c.l.s4 1966171168
  %v2387 = vunpack.c.0.s8 %v2386
  %v2388 = vlaneseq
  %v2389 = vshrl.u32 %v2388, 7
  %v2390 = vsub.s32 %v2387, %v2389
  %v2391 = vrot.slane %v2383, %v2390
  %v2393 = vunpack.c.l.s4 1966171168
  %v2394 = vunpack.c.0.s8 %v2393
  %v2395 = vlaneseq
  %v2396 = vshrl.u32 %v2395, 7
  %v2397 = vsub.s32 %v2394, %v2396
  %v2398 = vrot.slane %v2384, %v2397
  %v2407 = vpack.c.bf16 %v2299, %v2233
  %v2408 = vpack.c.bf16 %v2300, %v2234
  %v2409 = vpack.c.bf16 %v2391, %v2365
  %v2410 = vpack.c.bf16 %v2398, %v2366
  %v2412 = vlaneseq
  %v2413 = vshrl.u32 %v2412, 7
  %v2414 = vsub.s32 0, %v2413
  %v2415 = vrot.slane %v1661, %v2414
  %v2437 = vunpack.c.l.b16 %v1641
  %v2438 = vunpack.c.l.b16 %v1642
  %v2439 = vunpack.c.l.b16 %v1643
  %v2440 = vunpack.c.l.b16 %v1644
  %v2441 = vunpack.c.l.b16 %v1645
  %v2442 = vunpack.c.l.b16 %v1646
  %v2443 = vunpack.c.l.b16 %v1647
  %v2444 = vunpack.c.l.b16 %v1648
  %v2445 = vunpack.c.l.b16 %v1649
  %v2446 = vunpack.c.l.b16 %v1650
  %v2447 = vunpack.c.l.b16 %v1651
  %v2448 = vunpack.c.l.b16 %v1652
  %v2449 = vunpack.c.l.b16 %v1653
  %v2450 = vunpack.c.l.b16 %v1654
  %v2451 = vunpack.c.l.b16 %v1655
  %v2452 = vunpack.c.l.b16 %v1656
  %v2453 = vunpack.c.l.b16 %v1657
  %v2454 = vunpack.c.l.b16 %v1658
  %v2455 = vunpack.c.l.b16 %v1659
  %v2456 = vunpack.c.l.b16 %v1660
  %v2457 = vpack.c.b16 %v2438, %v2437
  %v2458 = vpack.c.b16 %v2440, %v2439
  %v2459 = vpack.c.b16 %v2442, %v2441
  %v2460 = vpack.c.b16 %v2444, %v2443
  %v2461 = vpack.c.b16 %v2446, %v2445
  %v2462 = vpack.c.b16 %v2448, %v2447
  %v2463 = vpack.c.b16 %v2450, %v2449
  %v2464 = vpack.c.b16 %v2452, %v2451
  %v2465 = vpack.c.b16 %v2454, %v2453
  %v2466 = vpack.c.b16 %v2456, %v2455
  %v2478 = vsel %vm52, %v2408, 0
  %v2481 = vsel %vm52, %v2410, 0
  %2483 = vmatprep.subr.bf16.mxu0 0
  %2484 = vmatpush1.bf16.msra.mxu0 %v2457
  %2485 = vmatprep.subr.bf16.mxu0 0
  %2486 = vmatpush1.bf16.msra.mxu0 %v2458
  %2487 = vmatprep.subr.bf16.mxu0 0
  %2488 = vmatpush1.bf16.msra.mxu0 %v2459
  %2489 = vmatprep.subr.bf16.mxu0 0
  %2490 = vmatpush1.bf16.msra.mxu0 %v2460
  %2491 = vmatprep.subr.bf16.mxu0 0
  %2492 = vmatpush1.bf16.msra.mxu0 %v2461
  %2493 = vmatprep.subr.bf16.mxu0 0
  %2494 = vmatpush1.bf16.msra.mxu0 %v2462
  %2495 = vmatprep.subr.bf16.mxu0 0
  %2496 = vmatpush1.bf16.msra.mxu0 %v2463
  %2497 = vmatprep.subr.bf16.mxu0 0
  %2498 = vmatpush1.bf16.msra.mxu0 %v2464
  %2499 = vmatprep.subr.bf16.mxu0 0
  %2500 = vmatpush1.bf16.msra.mxu0 %v2465
  %2501 = vmatprep.subr.bf16.mxu0 0
  %2502 = vmatpush1.bf16.msra.mxu0 %v2466
  %2503 = vmatprep.subr.bf16.mxu0 0
  %2504 = vmatpush1.bf16.msra.mxu0 0
  %2505 = vmatprep.subr.bf16.mxu0 0
  %2506 = vmatpush1.bf16.msra.mxu0 0
  %2507 = vmatprep.subr.bf16.mxu0 0
  %2508 = vmatpush1.bf16.msra.mxu0 0
  %2509 = vmatprep.subr.bf16.mxu0 0
  %2510 = vmatpush1.bf16.msra.mxu0 0
  %2511 = vmatprep.subr.bf16.mxu0 0
  %2512 = vmatpush1.bf16.msra.mxu0 0
  %2513 = vmatprep.subr.bf16.mxu0 0
  %2514 = vmatpush1.bf16.msra.mxu0 0
  %2515 = vmatprep.mubr.bf16.mxu0 %v2478
  %2516 = vmatmul.mubr.bf16.gmra.mrb[0].mxu0 %v2407
  %v2517 = vpop.f32.mrb[0].mxu0
  %v2518 = vadd.f32 %v2415, %v2517
  %v2519 = vpop.f32.mrb[0].mxu0
  %v2520 = vpop.f32.mrb[0].mxu0
  %v2521 = vadd.f32 %v2415, %v2520
  %v2522 = vpop.f32.mrb[0].mxu0
  %2523 = vmatprep.mubr.bf16.mxu0 %v2481
  %2524 = vmatmul.mubr.bf16.gmra.mrb[0].mxu0 %v2409
  %v2525 = vpop.f32.mrb[0].mxu0
  %v2526 = vadd.f32 %v2415, %v2525
  %v2527 = vpop.f32.mrb[0].mxu0
  %v2528 = vpop.f32.mrb[0].mxu0
  %v2529 = vadd.f32 %v2415, %v2528
  %v2530 = vpop.f32.mrb[0].mxu0
  %2531 = vdwg.mxu0
  %v2532 = vmax.f32 %v2518, 0.0
  %v2533 = vmax.f32 %v2521, 0.0
  %v2534 = vmax.f32 %v2526, 0.0
  %v2535 = vmax.f32 %v2529, 0.0
  %v2540 = vcombine.high %v2532, %v2532
  %v2542 = vunpack.c.l.s4 1966171168
  %v2543 = vunpack.c.0.s8 %v2542
  %v2544 = vlaneseq
  %v2545 = vshrl.u32 %v2544, 7
  %v2546 = vsub.s32 %v2543, %v2545
  %v2547 = vrot.slane %v2532, %v2546
  %v2549 = vunpack.c.l.s4 1966171168
  %v2550 = vunpack.c.0.s8 %v2549
  %v2551 = vlaneseq
  %v2552 = vshrl.u32 %v2551, 7
  %v2553 = vsub.s32 %v2550, %v2552
  %v2554 = vrot.slane %v2540, %v2553
  %v2555 = vcombine.high %v2547, %v2547
  %v2556 = vcombine.high %v2554, %v2554
  %v2558 = vunpack.c.l.s4 1966171168
  %v2559 = vunpack.c.0.s8 %v2558
  %v2560 = vlaneseq
  %v2561 = vshrl.u32 %v2560, 7
  %v2562 = vsub.s32 %v2559, %v2561
  %v2563 = vrot.slane %v2547, %v2562
  %v2565 = vunpack.c.l.s4 1966171168
  %v2566 = vunpack.c.0.s8 %v2565
  %v2567 = vlaneseq
  %v2568 = vshrl.u32 %v2567, 7
  %v2569 = vsub.s32 %v2566, %v2568
  %v2570 = vrot.slane %v2554, %v2569
  %v2572 = vunpack.c.l.s4 1966171168
  %v2573 = vunpack.c.0.s8 %v2572
  %v2574 = vlaneseq
  %v2575 = vshrl.u32 %v2574, 7
  %v2576 = vsub.s32 %v2573, %v2575
  %v2577 = vrot.slane %v2555, %v2576
  %v2579 = vunpack.c.l.s4 1966171168
  %v2580 = vunpack.c.0.s8 %v2579
  %v2581 = vlaneseq
  %v2582 = vshrl.u32 %v2581, 7
  %v2583 = vsub.s32 %v2580, %v2582
  %v2584 = vrot.slane %v2556, %v2583
  %v2585 = vcombine.high %v2563, %v2563
  %v2586 = vcombine.high %v2570, %v2570
  %v2587 = vcombine.high %v2577, %v2577
  %v2588 = vcombine.high %v2584, %v2584
  %v2589 = vcombine.high %v2533, %v2533
  %v2591 = vunpack.c.l.s4 1966171168
  %v2592 = vunpack.c.0.s8 %v2591
  %v2593 = vlaneseq
  %v2594 = vshrl.u32 %v2593, 7
  %v2595 = vsub.s32 %v2592, %v2594
  %v2596 = vrot.slane %v2533, %v2595
  %v2598 = vunpack.c.l.s4 1966171168
  %v2599 = vunpack.c.0.s8 %v2598
  %v2600 = vlaneseq
  %v2601 = vshrl.u32 %v2600, 7
  %v2602 = vsub.s32 %v2599, %v2601
  %v2603 = vrot.slane %v2589, %v2602
  %v2604 = vcombine.high %v2596, %v2596
  %v2605 = vcombine.high %v2603, %v2603
  %v2607 = vunpack.c.l.s4 1966171168
  %v2608 = vunpack.c.0.s8 %v2607
  %v2609 = vlaneseq
  %v2610 = vshrl.u32 %v2609, 7
  %v2611 = vsub.s32 %v2608, %v2610
  %v2612 = vrot.slane %v2596, %v2611
  %v2614 = vunpack.c.l.s4 1966171168
  %v2615 = vunpack.c.0.s8 %v2614
  %v2616 = vlaneseq
  %v2617 = vshrl.u32 %v2616, 7
  %v2618 = vsub.s32 %v2615, %v2617
  %v2619 = vrot.slane %v2603, %v2618
  %v2621 = vunpack.c.l.s4 1966171168
  %v2622 = vunpack.c.0.s8 %v2621
  %v2623 = vlaneseq
  %v2624 = vshrl.u32 %v2623, 7
  %v2625 = vsub.s32 %v2622, %v2624
  %v2626 = vrot.slane %v2604, %v2625
  %v2628 = vunpack.c.l.s4 1966171168
  %v2629 = vunpack.c.0.s8 %v2628
  %v2630 = vlaneseq
  %v2631 = vshrl.u32 %v2630, 7
  %v2632 = vsub.s32 %v2629, %v2631
  %v2633 = vrot.slane %v2605, %v2632
  %v2634 = vcombine.high %v2612, %v2612
  %v2635 = vcombine.high %v2619, %v2619
  %v2636 = vcombine.high %v2626, %v2626
  %v2637 = vcombine.high %v2633, %v2633
  %v2638 = vcombine.high %v2534, %v2534
  %v2640 = vunpack.c.l.s4 1966171168
  %v2641 = vunpack.c.0.s8 %v2640
  %v2642 = vlaneseq
  %v2643 = vshrl.u32 %v2642, 7
  %v2644 = vsub.s32 %v2641, %v2643
  %v2645 = vrot.slane %v2534, %v2644
  %v2647 = vunpack.c.l.s4 1966171168
  %v2648 = vunpack.c.0.s8 %v2647
  %v2649 = vlaneseq
  %v2650 = vshrl.u32 %v2649, 7
  %v2651 = vsub.s32 %v2648, %v2650
  %v2652 = vrot.slane %v2638, %v2651
  %v2653 = vcombine.high %v2645, %v2645
  %v2654 = vcombine.high %v2652, %v2652
  %v2656 = vunpack.c.l.s4 1966171168
  %v2657 = vunpack.c.0.s8 %v2656
  %v2658 = vlaneseq
  %v2659 = vshrl.u32 %v2658, 7
  %v2660 = vsub.s32 %v2657, %v2659
  %v2661 = vrot.slane %v2645, %v2660
  %v2663 = vunpack.c.l.s4 1966171168
  %v2664 = vunpack.c.0.s8 %v2663
  %v2665 = vlaneseq
  %v2666 = vshrl.u32 %v2665, 7
  %v2667 = vsub.s32 %v2664, %v2666
  %v2668 = vrot.slane %v2652, %v2667
  %v2670 = vunpack.c.l.s4 1966171168
  %v2671 = vunpack.c.0.s8 %v2670
  %v2672 = vlaneseq
  %v2673 = vshrl.u32 %v2672, 7
  %v2674 = vsub.s32 %v2671, %v2673
  %v2675 = vrot.slane %v2653, %v2674
  %v2677 = vunpack.c.l.s4 1966171168
  %v2678 = vunpack.c.0.s8 %v2677
  %v2679 = vlaneseq
  %v2680 = vshrl.u32 %v2679, 7
  %v2681 = vsub.s32 %v2678, %v2680
  %v2682 = vrot.slane %v2654, %v2681
  %v2683 = vcombine.high %v2661, %v2661
  %v2684 = vcombine.high %v2668, %v2668
  %v2685 = vcombine.high %v2675, %v2675
  %v2686 = vcombine.high %v2682, %v2682
  %v2688 = vunpack.c.l.s4 1966171168
  %v2689 = vunpack.c.0.s8 %v2688
  %v2690 = vlaneseq
  %v2691 = vshrl.u32 %v2690, 7
  %v2692 = vsub.s32 %v2689, %v2691
  %v2693 = vrot.slane %v2535, %v2692
  %v2694 = vcombine.high %v2693, %v2693
  %v2696 = vunpack.c.l.s4 1966171168
  %v2697 = vunpack.c.0.s8 %v2696
  %v2698 = vlaneseq
  %v2699 = vshrl.u32 %v2698, 7
  %v2700 = vsub.s32 %v2697, %v2699
  %v2701 = vrot.slane %v2693, %v2700
  %v2703 = vunpack.c.l.s4 1966171168
  %v2704 = vunpack.c.0.s8 %v2703
  %v2705 = vlaneseq
  %v2706 = vshrl.u32 %v2705, 7
  %v2707 = vsub.s32 %v2704, %v2706
  %v2708 = vrot.slane %v2694, %v2707
  %v2709 = vcombine.high %v2701, %v2701
  %v2710 = vcombine.high %v2708, %v2708
  %v2711 = vcombine.low %v2563, %v2577
  %v2712 = vcombine.low %v2585, %v2587
  %v2713 = vcombine.low %v2570, %v2584
  %v2715 = vunpack.c.l.s4 1966171168
  %v2716 = vunpack.c.0.s8 %v2715
  %v2717 = vlaneseq
  %v2718 = vshrl.u32 %v2717, 7
  %v2719 = vsub.s32 %v2716, %v2718
  %v2720 = vrot.slane %v2711, %v2719
  %v2722 = vunpack.c.l.s4 1966171168
  %v2723 = vunpack.c.0.s8 %v2722
  %v2724 = vlaneseq
  %v2725 = vshrl.u32 %v2724, 7
  %v2726 = vsub.s32 %v2723, %v2725
  %v2727 = vrot.slane %v2712, %v2726
  %v2729 = vunpack.c.l.s4 1966171168
  %v2730 = vunpack.c.0.s8 %v2729
  %v2731 = vlaneseq
  %v2732 = vshrl.u32 %v2731, 7
  %v2733 = vsub.s32 %v2730, %v2732
  %v2734 = vrot.slane %v2713, %v2733
  %v2736 = vunpack.c.l.s4 1966171168
  %v2737 = vunpack.c.0.s8 %v2736
  %v2738 = vlaneseq
  %v2739 = vshrl.u32 %v2738, 7
  %v2740 = vsub.s32 %v2737, %v2739
  %v2741 = vrot.slane %v2586, %v2740
  %v2742 = vcombine.low %v2720, %v2727
  %v2743 = vcombine.low %v2734, %v2741
  %v2745 = vunpack.c.l.s4 1966171168
  %v2746 = vunpack.c.0.s8 %v2745
  %v2747 = vlaneseq
  %v2748 = vshrl.u32 %v2747, 7
  %v2749 = vsub.s32 %v2746, %v2748
  %v2750 = vrot.slane %v2742, %v2749
  %v2752 = vunpack.c.l.s4 1966171168
  %v2753 = vunpack.c.0.s8 %v2752
  %v2754 = vlaneseq
  %v2755 = vshrl.u32 %v2754, 7
  %v2756 = vsub.s32 %v2753, %v2755
  %v2757 = vrot.slane %v2743, %v2756
  %v2758 = vcombine.low %v2750, %v2757
  %v2759 = vcombine.low %v2588, %v2612
  %v2760 = vcombine.low %v2626, %v2634
  %v2761 = vcombine.low %v2636, %v2619
  %v2763 = vunpack.c.l.s4 1966171168
  %v2764 = vunpack.c.0.s8 %v2763
  %v2765 = vlaneseq
  %v2766 = vshrl.u32 %v2765, 7
  %v2767 = vsub.s32 %v2764, %v2766
  %v2768 = vrot.slane %v2759, %v2767
  %v2770 = vunpack.c.l.s4 1966171168
  %v2771 = vunpack.c.0.s8 %v2770
  %v2772 = vlaneseq
  %v2773 = vshrl.u32 %v2772, 7
  %v2774 = vsub.s32 %v2771, %v2773
  %v2775 = vrot.slane %v2760, %v2774
  %v2777 = vunpack.c.l.s4 1966171168
  %v2778 = vunpack.c.0.s8 %v2777
  %v2779 = vlaneseq
  %v2780 = vshrl.u32 %v2779, 7
  %v2781 = vsub.s32 %v2778, %v2780
  %v2782 = vrot.slane %v2761, %v2781
  %v2784 = vunpack.c.l.s4 1966171168
  %v2785 = vunpack.c.0.s8 %v2784
  %v2786 = vlaneseq
  %v2787 = vshrl.u32 %v2786, 7
  %v2788 = vsub.s32 %v2785, %v2787
  %v2789 = vrot.slane %v2633, %v2788
  %v2790 = vcombine.low %v2768, %v2775
  %v2791 = vcombine.low %v2782, %v2789
  %v2793 = vunpack.c.l.s4 1966171168
  %v2794 = vunpack.c.0.s8 %v2793
  %v2795 = vlaneseq
  %v2796 = vshrl.u32 %v2795, 7
  %v2797 = vsub.s32 %v2794, %v2796
  %v2798 = vrot.slane %v2790, %v2797
  %v2800 = vunpack.c.l.s4 1966171168
  %v2801 = vunpack.c.0.s8 %v2800
  %v2802 = vlaneseq
  %v2803 = vshrl.u32 %v2802, 7
  %v2804 = vsub.s32 %v2801, %v2803
  %v2805 = vrot.slane %v2791, %v2804
  %v2806 = vcombine.low %v2798, %v2805
  %v2807 = vcombine.low %v2635, %v2637
  %v2808 = vcombine.low %v2661, %v2675
  %v2809 = vcombine.low %v2683, %v2685
  %v2811 = vunpack.c.l.s4 1966171168
  %v2812 = vunpack.c.0.s8 %v2811
  %v2813 = vlaneseq
  %v2814 = vshrl.u32 %v2813, 7
  %v2815 = vsub.s32 %v2812, %v2814
  %v2816 = vrot.slane %v2807, %v2815
  %v2818 = vunpack.c.l.s4 1966171168
  %v2819 = vunpack.c.0.s8 %v2818
  %v2820 = vlaneseq
  %v2821 = vshrl.u32 %v2820, 7
  %v2822 = vsub.s32 %v2819, %v2821
  %v2823 = vrot.slane %v2808, %v2822
  %v2825 = vunpack.c.l.s4 1966171168
  %v2826 = vunpack.c.0.s8 %v2825
  %v2827 = vlaneseq
  %v2828 = vshrl.u32 %v2827, 7
  %v2829 = vsub.s32 %v2826, %v2828
  %v2830 = vrot.slane %v2809, %v2829
  %v2832 = vunpack.c.l.s4 1966171168
  %v2833 = vunpack.c.0.s8 %v2832
  %v2834 = vlaneseq
  %v2835 = vshrl.u32 %v2834, 7
  %v2836 = vsub.s32 %v2833, %v2835
  %v2837 = vrot.slane %v2668, %v2836
  %v2838 = vcombine.low %v2816, %v2823
  %v2839 = vcombine.low %v2830, %v2837
  %v2841 = vunpack.c.l.s4 1966171168
  %v2842 = vunpack.c.0.s8 %v2841
  %v2843 = vlaneseq
  %v2844 = vshrl.u32 %v2843, 7
  %v2845 = vsub.s32 %v2842, %v2844
  %v2846 = vrot.slane %v2838, %v2845
  %v2848 = vunpack.c.l.s4 1966171168
  %v2849 = vunpack.c.0.s8 %v2848
  %v2850 = vlaneseq
  %v2851 = vshrl.u32 %v2850, 7
  %v2852 = vsub.s32 %v2849, %v2851
  %v2853 = vrot.slane %v2839, %v2852
  %v2854 = vcombine.low %v2846, %v2853
  %v2855 = vcombine.low %v2682, %v2684
  %v2856 = vcombine.low %v2686, %v2701
  %v2857 = vcombine.low %v2708, %v2709
  %v2859 = vunpack.c.l.s4 1966171168
  %v2860 = vunpack.c.0.s8 %v2859
  %v2861 = vlaneseq
  %v2862 = vshrl.u32 %v2861, 7
  %v2863 = vsub.s32 %v2860, %v2862
  %v2864 = vrot.slane %v2855, %v2863
  %v2866 = vunpack.c.l.s4 1966171168
  %v2867 = vunpack.c.0.s8 %v2866
  %v2868 = vlaneseq
  %v2869 = vshrl.u32 %v2868, 7
  %v2870 = vsub.s32 %v2867, %v2869
  %v2871 = vrot.slane %v2856, %v2870
  %v2873 = vunpack.c.l.s4 1966171168
  %v2874 = vunpack.c.0.s8 %v2873
  %v2875 = vlaneseq
  %v2876 = vshrl.u32 %v2875, 7
  %v2877 = vsub.s32 %v2874, %v2876
  %v2878 = vrot.slane %v2857, %v2877
  %v2880 = vunpack.c.l.s4 1966171168
  %v2881 = vunpack.c.0.s8 %v2880
  %v2882 = vlaneseq
  %v2883 = vshrl.u32 %v2882, 7
  %v2884 = vsub.s32 %v2881, %v2883
  %v2885 = vrot.slane %v2710, %v2884
  %v2886 = vcombine.low %v2864, %v2871
  %v2887 = vcombine.low %v2878, %v2885
  %v2889 = vunpack.c.l.s4 1966171168
  %v2890 = vunpack.c.0.s8 %v2889
  %v2891 = vlaneseq
  %v2892 = vshrl.u32 %v2891, 7
  %v2893 = vsub.s32 %v2890, %v2892
  %v2894 = vrot.slane %v2886, %v2893
  %v2896 = vunpack.c.l.s4 1966171168
  %v2897 = vunpack.c.0.s8 %v2896
  %v2898 = vlaneseq
  %v2899 = vshrl.u32 %v2898, 7
  %v2900 = vsub.s32 %v2897, %v2899
  %v2901 = vrot.slane %v2887, %v2900
  %v2902 = vcombine.low %v2894, %v2901
  %v2907 = vsel %vm1591, %v2758, -inf
  %v2908 = vrot.slane %v2907, 4
  %v2909 = vmax.f32 %v2907, %v2908
  %v2910 = vrot.slane %v2909, 2
  %v2911 = vmax.f32 %v2909, %v2910
  %v2912 = vrot.slane %v2911, 1
  %v2913 = vmax.f32 %v2911, %v2912
  %v2914 = vsel %vm1591, %v2806, -inf
  %v2915 = vrot.slane %v2914, 4
  %v2916 = vmax.f32 %v2914, %v2915
  %v2917 = vrot.slane %v2916, 2
  %v2918 = vmax.f32 %v2916, %v2917
  %v2919 = vrot.slane %v2918, 1
  %v2920 = vmax.f32 %v2918, %v2919
  %v2921 = vsel %vm1591, %v2854, -inf
  %v2922 = vrot.slane %v2921, 4
  %v2923 = vmax.f32 %v2921, %v2922
  %v2924 = vrot.slane %v2923, 2
  %v2925 = vmax.f32 %v2923, %v2924
  %v2926 = vrot.slane %v2925, 1
  %v2927 = vmax.f32 %v2925, %v2926
  %v2928 = vsel %vm1591, %v2902, -inf
  %v2929 = vrot.slane %v2928, 4
  %v2930 = vmax.f32 %v2928, %v2929
  %v2931 = vrot.slane %v2930, 2
  %v2932 = vmax.f32 %v2930, %v2931
  %v2933 = vrot.slane %v2932, 1
  %v2934 = vmax.f32 %v2932, %v2933
  %v2939 = vsel %vm342, %v1605, %v1598
  %v2940 = vsel %vm344, %v1612, %v2939
  %v2941 = vsel %vm346, %v1619, %v2940
  %v2947 = vsel %vm342, %v2920, %v2913
  %v2948 = vsel %vm344, %v2927, %v2947
  %v2949 = vsel %vm346, %v2934, %v2948
  %2950 = vrot.lane.b32.xlu0 %v2949, 32
  %v2951 = vpop.permute.xlu0 %2950
  %v2953 = vsel %vm52, %v2941, %v2951
  %v2955 = vrot.slane %v2953, 2
  %v2957 = vmul.f32 %v2953, %v2955
  %vm2958 = vcmask 517120
  %v2959 = vsel %vm2958, %v2957, 0.0
  %2960 = vadd.xlane.f32.xlu0 %v2959
  %v2961 = vpop.xlane.xlu0 %2960
  %v2962 = vmul.f32 %v2953, %v2953
  %v2963 = vsel %vm2958, %v2962, 0.0
  %2964 = vadd.xlane.f32.xlu0 %v2963
  %v2965 = vpop.xlane.xlu0 %2964
  %vm2966 = vcmask 519170
  %v2967 = vsel %vm2966, %v2962, 0.0
  %2968 = vadd.xlane.f32.xlu0 %v2967
  %v2969 = vpop.xlane.xlu0 %2968
  %v2971 = vrot.slane %v2969, 2
  %v2973 = vmul.f32 %v2965, %v2971
  %v2974 = vmax.f32 %v2973, 1e-16
  %v2975 = vrsqrt.pop %v2974
  %v2976 = vmul.f32 %v2974, %v2975
  %vm2977 = vcmp.eq.f32.partialorder %v2974, inf
  %v2978 = vsel %vm2977, %v2974, %v2976
  %vm2979 = vcmp.eq.f32.partialorder %v2974, 0.0
  %v2980 = vand.u32 %v2974, 2147483648
  %v2981 = vsel %vm2979, %v2980, %v2978
  %v2982 = vrcp.pop %v2981
  %v2983 = vmul.f32 %v2961, %v2982
  %v2984 = vmax.f32 %v2983, 0.0
  %v2985 = vmin.f32 %v2984, 1.0
  %vm2986 = vcmask 1024
  %2987 = vst.msk [vmem:[%s10] sm:$0x3] %vm2986, %v2985
  // Predicated region
  $region42: #{cnn_model_forward.1} parent=0 // pred_check
    _
  $region43: #{cnn_model_forward.1} parent=0 // pred_check_branch
    %2989 = sbr.rel (0) target = $region45
  $region44: #{cnn_model_forward.1} parent=0 // pred_region
    _
  $region45: #{cnn_model_forward.1} parent=0 // pred_fallthru
    _
  // Predicated region
  $region46: #{cnn_model_forward.1} parent=0 // pred_check
    _
  $region47: #{cnn_model_forward.1} parent=0 // pred_check_branch
    %2991 = sbr.rel (0) target = $region49
  $region48: #{cnn_model_forward.1} parent=0 // pred_region
    _
  $region49: #{cnn_model_forward.1} parent=0 // pred_fallthru
    _

</llo_original>
